<compile_context>
chip_gen: v6e
topology: v6e:2x2x1
jax: 0.10.0
libtpu: 0.0.40
codegen_flags: <defaults>
</compile_context>

<pallas_src>
import numpy as np
import jax
import jax.numpy as jnp
from jax.experimental import pallas as pl
from jax.experimental.pallas import tpu as pltpu

# ---------------- configuration consistent with the module -------------------
STFT_CHUNK = 32          # stft_chunk_size (hop / stride)
STFT_PAD = 16            # stft_pad_size (lookahead)
STFT_BACK = 0            # stft_back_pad
NUM_CH_AUDIO = 2
NUM_CH_VIB = 1
NUM_CH = NUM_CH_AUDIO + NUM_CH_VIB           # n_imics (num_ch passed to Net)
EMB_D = 16               # D (embedding dim)
NUM_SRC = 2              # num_src
NFFT = STFT_BACK + STFT_CHUNK + STFT_PAD     # 48
NFREQ = NFFT // 2 + 1                        # 25
FD = NFREQ * EMB_D                           # 400
DEC_N = 128              # decoder output lanes (S*NFFT=96 zero-padded to 128)
GN_EPS = 1e-5


# --------------------------- host-side constant build ------------------------
def _hann(n):
    return 0.5 - 0.5 * np.cos(2.0 * np.pi * np.arange(n) / n)


def _stft_bases():
    win = _hann(NFFT)                                            # (NFFT,)
    n = np.arange(NFFT)[:, None].astype(np.float64)
    k = np.arange(NFREQ)[None, :].astype(np.float64)
    ang = 2.0 * np.pi * n * k / NFFT                             # (NFFT, F)
    # analysis basis with window folded in: fwd[n, comp, f]
    fwd = np.stack([np.cos(ang), -np.sin(ang)], axis=1) * win[:, None, None]
    # synthesis basis with window folded in: inv[comp, f, n]
    cf = np.full((NFREQ,), 2.0)
    cf[0] = 1.0
    cf[-1] = 1.0
    inv = np.stack([np.cos(ang.T), -np.sin(ang.T)], axis=0)
    inv = inv * cf[None, :, None] / NFFT * win[None, None, :]
    return fwd, inv, win


def _compose_weights(rng):
    """Compose (DFT + embed conv) and (decoder conv + iDFT) at init time."""
    fwd, inv, win = _stft_bases()
    C, D, S, F = NUM_CH, EMB_D, NUM_SRC, NFREQ

    # synthetic TFGridNet front/back-end parameters (source not provided)
    w_emb = 0.1 * rng.standard_normal((D, C, 2, 3, 3))   # (d, c, comp, dt, df)
    b_emb = 0.1 * rng.standard_normal((D,))
    gamma = np.ones((D,))
    beta = np.zeros((D,))
    w_dec = 0.1 * rng.standard_normal((S, 2, D, 3, 3))   # (s, comp, d, dt, df)
    b_dec = 0.1 * rng.standard_normal((S, 2))

    # ---- W1[dt, (c, n), (f, d)]: windowed DFT composed with 3x3 embed conv
    fwd_pad = np.zeros((NFFT, 2, F + 2))
    fwd_pad[:, :, 1:F + 1] = fwd
    # FS[n, comp, df_idx, f] = fwd[n, comp, f + df_idx - 1] (0 outside)
    FS = np.stack([fwd_pad[:, :, j:j + F] for j in range(3)], axis=2)
    W1 = np.einsum('dcrte,nref->tcnfd', w_emb, FS).reshape(3, C * NFFT, F * D)
    b1 = np.tile(b_emb[None, :], (F, 1)).reshape(1, F * D)
    g1 = np.tile(gamma[None, :], (F, 1)).reshape(1, F * D)
    be1 = np.tile(beta[None, :], (F, 1)).reshape(1, F * D)

    # ---- W2[dt, (f, d), (s, n)]: 3x3 decoder conv composed with windowed iDFT
    inv_pad = np.zeros((2, F + 2, NFFT))
    inv_pad[:, 1:F + 1, :] = inv
    # ISH[comp, df_idx, f, n] = inv[comp, f - (df_idx - 1), n] (0 outside)
    ISH = np.stack([inv_pad[:, 2 - j:2 - j + F, :] for j in range(3)], axis=1)
    W2 = np.einsum('srdte,refn->tfdsn', w_dec, ISH).reshape(3, F * D, S * NFFT)
    b2 = np.einsum('sr,rfn->sn', b_dec, inv).reshape(1, S * NFFT)

    # zero-pad decoder output columns to 128 lanes (lane-dense MXU result)
    W2p = np.zeros((3, F * D, DEC_N), W2.dtype)
    W2p[..., :S * NFFT] = W2
    b2p = np.zeros((1, DEC_N), b2.dtype)
    b2p[:, :S * NFFT] = b2
    return W1, b1, g1, be1, W2p, b2p, win


# ------------------------------ model wrapper --------------------------------
class MultimodalNetPallas:
    def __init__(self, seed=0):
        rng = np.random.default_rng(seed)
        W1, b1, g1, be1, W2, b2, win = _compose_weights(rng)
        # bf16 MXU operands, f32 accumulation / bias / affine params
        self.w1 = jnp.asarray(W1, jnp.bfloat16)     # (3, C*NFFT, FD)
        self.b1 = jnp.asarray(b1, jnp.float32)
        self.g1 = jnp.asarray(g1, jnp.float32)
        self.be1 = jnp.asarray(be1, jnp.float32)
        self.w2 = jnp.asarray(W2, jnp.bfloat16)     # (3, FD, 128)
        self.b2 = jnp.asarray(b2, jnp.float32)
        self.win = win                              # numpy, for static OLA norm

    # --- Multimodal_Net.forward semantics ------------------------------------
    def __call__(self, audio, vibration, pad=True):
        if audio.ndim == 2:
            audio = audio[:, None, :]
        if vibration.ndim == 2:
            vibration = vibration[:, None, :]
        x = jnp.concatenate([audio, vibration], axis=1).astype(jnp.float32)
        B, C, T = x.shape
        assert C == NUM_CH

        hop = STFT_CHUNK
        mod = 0
        if pad:
            if T % hop != 0:
                mod = hop - T % hop
            # mod_pad: pad-to-chunk then (back, lookahead) pad
            x = jnp.pad(x, ((0, 0), (0, 0), (STFT_BACK, mod + STFT_PAD)))
        Tp = x.shape[-1]
        Tf = (Tp - NFFT) // hop + 1                  # streaming frame count
        T_out = Tp - STFT_BACK - STFT_PAD - mod      # == original T (pad=True)
        S = NUM_SRC
        K = NUM_CH * NFFT                            # 144

        # ---- batch-block sizing: real MXU M = Bblk*Tf rows per grid step,
        # but keep >= 2 "parallel" grid steps when B >= 2 (v7x: 2 TensorCores)
        target_rows = 256
        Bblk = max(1, min(B, max(1, target_rows // max(Tf, 1))))
        if B >= 2:
            Bblk = min(Bblk, max(1, B // 2))
        num_blocks = -(-B // Bblk)
        B_pad = num_blocks * Bblk
        Mblk = -(-(Bblk * Tf) // 8) * 8              # sublane-aligned rows/block
        rows_pad = Mblk - Bblk * Tf
        M_total = num_blocks * Mblk

        # ---- framing (im2col) done once in XLA; kernel LHS is row blocks of
        # (batch, time)-ordered frames
        if B_pad > B:
            x = jnp.pad(x, ((0, B_pad - B), (0, 0), (0, 0)))
        idx = hop * np.arange(Tf)[:, None] + np.arange(NFFT)[None, :]
        frames = x[:, :, idx]                                   # (B_pad,C,Tf,NFFT)
        frames = jnp.transpose(frames, (0, 2, 1, 3)).reshape(B_pad, Tf, K)
        frames = frames.reshape(num_blocks, Bblk * Tf, K)
        frames = jnp.pad(frames, ((0, 0), (0, rows_pad), (0, 0)))
        frames = frames.reshape(M_total, K)

        # ---- static per-row helpers (host-built; identical for every block)
        t_idx = np.arange(Bblk * Tf) % Tf
        mfirst = np.concatenate([(t_idx != 0).astype(np.float32),
                                 np.zeros(rows_pad, np.float32)])
        mlast = np.concatenate([(t_idx != Tf - 1).astype(np.float32),
                                np.zeros(rows_pad, np.float32)])
        mfirst = jnp.asarray(mfirst.reshape(Mblk, 1))
        mlast = jnp.asarray(mlast.reshape(Mblk, 1))

        b_idx = np.arange(Bblk * Tf) // Tf
        seg_np = np.zeros((Mblk, Mblk), np.float32)
        seg_np[:Bblk * Tf, :Bblk * Tf] = (b_idx[:, None] == b_idx[None, :])
        seg = jnp.asarray(seg_np)

        # static window-sum normalisation, laid out as hop-chunks per row
        L_ola = (Tf - 1) * hop + NFFT
        wsum = np.zeros((L_ola,), np.float64)
        w2s = self.win * self.win
        for t in range(Tf):
            wsum[t * hop:t * hop + NFFT] += w2s
        invw = (1.0 / np.maximum(wsum, 1e-8))[STFT_BACK:STFT_BACK + Tf * hop]
        invw = invw.copy()
        invw[T_out:] = 0.0                          # region trimmed away anyway
        invw = np.tile(invw.reshape(Tf, hop), (Bblk, 1))
        invw = np.concatenate([invw, np.zeros((rows_pad, hop))], axis=0)
        invw = jnp.asarray(invw, jnp.float32)

        inv_n = 1.0 / float(Tf * FD)                # GroupNorm element count

        # --------------------------- fused kernel ----------------------------
        def kernel(fx_ref, invw_ref, mf_ref, ml_ref, seg_ref,
                   w1_ref, b1_ref, g1_ref, be1_ref, w2_ref, b2_ref, o_ref):
            mf32 = mf_ref[...]                       # 0 at (t==0 | pad) rows
            ml32 = ml_ref[...]                       # 0 at (t==Tf-1 | pad) rows
            mf16 = mf32.astype(jnp.bfloat16)
            ml16 = ml32.astype(jnp.bfloat16)

            # frames for this block, rows ordered (batch, time)
            f0 = fx_ref[...].astype(jnp.bfloat16)                 # (Mblk, K)
            zK = jnp.zeros((1, K), jnp.bfloat16)
            fm = jnp.concatenate([zK, f0[:-1]], axis=0) * mf16     # frame t-1
            fp = jnp.concatenate([f0[1:], zK], axis=0) * ml16      # frame t+1

            # STFT + Conv2d(2C->D,3x3) as three composed bf16 matmuls (dt taps)
            emb = (jnp.dot(fm, w1_ref[0], preferred_element_type=jnp.float32)
                   + jnp.dot(f0, w1_ref[1], preferred_element_type=jnp.float32)
                   + jnp.dot(fp, w1_ref[2], preferred_element_type=jnp.float32)
                   + b1_ref[...])                                  # (Mblk, FD)

            # GroupNorm(1, D): one-pass stats, per batch item via segment matmul
            rs = jnp.sum(emb, axis=1, keepdims=True)               # (Mblk, 1)
            rs2 = jnp.sum(emb * emb, axis=1, keepdims=True)
            grp = jnp.dot(seg_ref[...], jnp.concatenate([rs, rs2], axis=1),
                          preferred_element_type=jnp.float32)       # (Mblk, 2)
            mu = grp[:, 0:1] * inv_n
            var = jnp.maximum(grp[:, 1:2] * inv_n - mu * mu, 0.0)
            y = (emb - mu) * jax.lax.rsqrt(var + GN_EPS)
            y = y * g1_ref[...] + be1_ref[...]

            # TODO(synk): TFGridNet's B GridNet blocks (intra/inter LSTM +
            # attention, streaming state) — source not provided; identity.

            yb = y.astype(jnp.bfloat16)
            zF = jnp.zeros((1, FD), jnp.bfloat16)
            ym = jnp.concatenate([zF, yb[:-1]], axis=0) * mf16
            yp = jnp.concatenate([yb[1:], zF], axis=0) * ml16

            # Conv2d(D->2*n_srcs,3x3) + windowed iDFT, lane-dense 128-col output
            dec = (jnp.dot(ym, w2_ref[0], preferred_element_type=jnp.float32)
                   + jnp.dot(yb, w2_ref[1], preferred_element_type=jnp.float32)
                   + jnp.dot(yp, w2_ref[2], preferred_element_type=jnp.float32)
                   + b2_ref[...])                                  # (Mblk, 128)

            # overlap-add via hop decomposition (hop=32, NFFT=48):
            #   out_chunk[t] = frame_t[:32] + [frame_{t-1}[32:48], 0*16]
            invw_v = invw_ref[...]                                  # (Mblk, 32)
            z16r = jnp.zeros((1, 16), jnp.float32)
            z16c = jnp.zeros((Mblk, 16), jnp.float32)
            outs = []
            for s in range(S):                                      # S == 2
                head = dec[:, s * NFFT:s * NFFT + hop]
                tail = dec[:, s * NFFT + hop:s * NFFT + NFFT]
                tail_prev = jnp.concatenate([z16r, tail[:-1]], axis=0) * mf32
                chunk = head + jnp.concatenate([tail_prev, z16c], axis=1)
                outs.append(chunk * invw_v)
            o_ref[...] = jnp.concatenate(outs, axis=1).astype(o_ref.dtype)

        grid_spec = pltpu.PrefetchScalarGridSpec(
            num_scalar_prefetch=0,
            grid=(num_blocks,),
            in_specs=[
                pl.BlockSpec((Mblk, K), lambda i: (i, 0)),           # frames
                pl.BlockSpec((Mblk, hop), lambda i: (0, 0)),         # 1/wsum
                pl.BlockSpec((Mblk, 1), lambda i: (0, 0)),           # mask t==0
                pl.BlockSpec((Mblk, 1), lambda i: (0, 0)),           # mask t==Tf-1
                pl.BlockSpec((Mblk, Mblk), lambda i: (0, 0)),        # GN segments
                pl.BlockSpec((3, K, FD), lambda i: (0, 0, 0)),       # W1 (dt taps)
                pl.BlockSpec((1, FD), lambda i: (0, 0)),             # b1
                pl.BlockSpec((1, FD), lambda i: (0, 0)),             # gamma
                pl.BlockSpec((1, FD), lambda i: (0, 0)),             # beta
                pl.BlockSpec((3, FD, DEC_N), lambda i: (0, 0, 0)),   # W2 (dt taps)
                pl.BlockSpec((1, DEC_N), lambda i: (0, 0)),          # b2
            ],
            out_specs=pl.BlockSpec((Mblk, S * hop), lambda i: (i, 0)),
        )

        flops = int(2 * M_total * (3 * K * FD + 3 * FD * DEC_N + 2 * Mblk))
        bytes_accessed = int(frames.size * 4 + invw.size * 4 + seg.size * 4
                             + self.w1.size * 2 + self.w2.size * 2
                             + (self.b1.size + self.g1.size + self.be1.size
                                + self.b2.size) * 4
                             + M_total * S * hop * 4)

        out = pl.pallas_call(
            kernel,
            out_shape=jax.ShapeDtypeStruct((M_total, S * hop), jnp.float32),
            grid_spec=grid_spec,
            compiler_params=pltpu.CompilerParams(
                dimension_semantics=("parallel",)),
            cost_estimate=pl.CostEstimate(flops=flops,
                                          transcendentals=int(M_total),
                                          bytes_accessed=bytes_accessed),
        )(frames, invw, mfirst, mlast, seg,
          self.w1, self.b1, self.g1, self.be1, self.w2, self.b2)

        # un-block, hop-chunks -> time axis, trim lookahead/mod padding
        out = out.reshape(num_blocks, Mblk, S, hop)[:, :Bblk * Tf]
        out = out.reshape(B_pad, Tf, S, hop)
        out = jnp.transpose(out, (0, 2, 1, 3)).reshape(B_pad, S, Tf * hop)
        return out[:B, :, :T_out]


if __name__ == "__main__":
    key = jax.random.PRNGKey(0)
    ka, kv = jax.random.split(key)
    model = MultimodalNetPallas(seed=0)

    B, T = 2, 70
    audio = jax.random.normal(ka, (B, NUM_CH_AUDIO, T), jnp.float32)
    vibration = jax.random.normal(kv, (B, NUM_CH_VIB, T), jnp.float32)

    out = model(audio, vibration)
    out = jax.block_until_ready(out)

    assert out.shape == (B, NUM_SRC, T), out.shape
    assert bool(jnp.all(jnp.isfinite(out)))
    print("KERNEL_OK")
</pallas_src>

<mosaic_0001>
module attributes {stable_mosaic.version = 11 : i64} {
  func.func @kernel(%arg0: i32, %arg1: memref<8x144xf32, #tpu.memory_space<vmem>>, %arg2: memref<8x32xf32, #tpu.memory_space<vmem>>, %arg3: memref<8x1xf32, #tpu.memory_space<vmem>>, %arg4: memref<8x1xf32, #tpu.memory_space<vmem>>, %arg5: memref<8x8xf32, #tpu.memory_space<vmem>>, %arg6: memref<3x144x400xbf16, #tpu.memory_space<vmem>>, %arg7: memref<1x400xf32, #tpu.memory_space<vmem>>, %arg8: memref<1x400xf32, #tpu.memory_space<vmem>>, %arg9: memref<1x400xf32, #tpu.memory_space<vmem>>, %arg10: memref<3x400x128xbf16, #tpu.memory_space<vmem>>, %arg11: memref<1x128xf32, #tpu.memory_space<vmem>>, %arg12: memref<8x64xf32, #tpu.memory_space<vmem>>) attributes {dimension_semantics = [#tpu.dimension_semantics<parallel>], iteration_bounds = array<i64: 2>, scalar_prefetch = 0 : i64, scratch_operands = 0 : i64, tpu.core_type = #tpu.core_type<tc>, window_params = [{transform_indices = @transform_0, window_bounds = array<i64: 8, 144>}, {pipeline_mode = #tpu.pipeline_mode<synchronous>, transform_indices = @transform_1, window_bounds = array<i64: 8, 32>}, {pipeline_mode = #tpu.pipeline_mode<synchronous>, transform_indices = @transform_2, window_bounds = array<i64: 8, 1>}, {pipeline_mode = #tpu.pipeline_mode<synchronous>, transform_indices = @transform_3, window_bounds = array<i64: 8, 1>}, {pipeline_mode = #tpu.pipeline_mode<synchronous>, transform_indices = @transform_4, window_bounds = array<i64: 8, 8>}, {pipeline_mode = #tpu.pipeline_mode<synchronous>, transform_indices = @transform_5, window_bounds = array<i64: 3, 144, 400>}, {pipeline_mode = #tpu.pipeline_mode<synchronous>, transform_indices = @transform_6, window_bounds = array<i64: 1, 400>}, {pipeline_mode = #tpu.pipeline_mode<synchronous>, transform_indices = @transform_7, window_bounds = array<i64: 1, 400>}, {pipeline_mode = #tpu.pipeline_mode<synchronous>, transform_indices = @transform_8, window_bounds = array<i64: 1, 400>}, {pipeline_mode = #tpu.pipeline_mode<synchronous>, transform_indices = @transform_9, window_bounds = array<i64: 3, 400, 128>}, {pipeline_mode = #tpu.pipeline_mode<synchronous>, transform_indices = @transform_10, window_bounds = array<i64: 1, 128>}, {transform_indices = @transform_11, window_bounds = array<i64: 8, 64>}]} {
    %c0 = arith.constant 0 : index
    %c0_0 = arith.constant 0 : index
    %0 = vector.load %arg3[%c0, %c0_0] : memref<8x1xf32, #tpu.memory_space<vmem>>, vector<8x1xf32>
    %c0_1 = arith.constant 0 : index
    %c0_2 = arith.constant 0 : index
    %1 = vector.load %arg4[%c0_1, %c0_2] : memref<8x1xf32, #tpu.memory_space<vmem>>, vector<8x1xf32>
    %2 = arith.truncf %0 : vector<8x1xf32> to vector<8x1xbf16>
    %3 = arith.truncf %1 : vector<8x1xf32> to vector<8x1xbf16>
    %c0_3 = arith.constant 0 : index
    %c0_4 = arith.constant 0 : index
    %4 = vector.load %arg1[%c0_3, %c0_4] : memref<8x144xf32, #tpu.memory_space<vmem>>, vector<8x144xf32>
    %5 = arith.truncf %4 : vector<8x144xf32> to vector<8x144xbf16>
    %cst = arith.constant 0.000000e+00 : bf16
    %6 = vector.broadcast %cst : bf16 to vector<1x144xbf16>
    %7 = vector.extract_strided_slice %5 {offsets = [0, 0], sizes = [7, 144], strides = [1, 1]} : vector<8x144xbf16> to vector<7x144xbf16>
    %8 = tpu.concatenate %6, %7 in 0 : vector<1x144xbf16>, vector<7x144xbf16> -> vector<8x144xbf16>
    %9 = vector.broadcast %2 : vector<8x1xbf16> to vector<8x144xbf16>
    %10 = arith.mulf %8, %9 : vector<8x144xbf16>
    %11 = vector.extract_strided_slice %5 {offsets = [1, 0], sizes = [7, 144], strides = [1, 1]} : vector<8x144xbf16> to vector<7x144xbf16>
    %12 = tpu.concatenate %11, %6 in 0 : vector<7x144xbf16>, vector<1x144xbf16> -> vector<8x144xbf16>
    %13 = vector.broadcast %3 : vector<8x1xbf16> to vector<8x144xbf16>
    %14 = arith.mulf %12, %13 : vector<8x144xbf16>
    %c0_5 = arith.constant 0 : index
    %c0_6 = arith.constant 0 : index
    %c0_7 = arith.constant 0 : index
    %15 = vector.load %arg6[%c0_5, %c0_6, %c0_7] : memref<3x144x400xbf16, #tpu.memory_space<vmem>>, vector<1x144x400xbf16>
    %16 = vector.shape_cast %15 : vector<1x144x400xbf16> to vector<144x400xbf16>
    %cst_8 = arith.constant dense<0.000000e+00> : vector<8x400xf32>
    %17 = tpu.matmul %10, %16, %cst_8 {dimension_numbers = #tpu.dot_dimension_numbers<[1], [0], [0], [1], [0, 0, 1, 1], [], []>} : vector<8x144xbf16>, vector<144x400xbf16>, vector<8x400xf32> -> vector<8x400xf32>
    %c1 = arith.constant 1 : index
    %c0_9 = arith.constant 0 : index
    %c0_10 = arith.constant 0 : index
    %18 = vector.load %arg6[%c1, %c0_9, %c0_10] : memref<3x144x400xbf16, #tpu.memory_space<vmem>>, vector<1x144x400xbf16>
    %19 = vector.shape_cast %18 : vector<1x144x400xbf16> to vector<144x400xbf16>
    %cst_11 = arith.constant dense<0.000000e+00> : vector<8x400xf32>
    %20 = tpu.matmul %5, %19, %cst_11 {dimension_numbers = #tpu.dot_dimension_numbers<[1], [0], [0], [1], [0, 0, 1, 1], [], []>} : vector<8x144xbf16>, vector<144x400xbf16>, vector<8x400xf32> -> vector<8x400xf32>
    %21 = arith.addf %17, %20 : vector<8x400xf32>
    %c2 = arith.constant 2 : index
    %c0_12 = arith.constant 0 : index
    %c0_13 = arith.constant 0 : index
    %22 = vector.load %arg6[%c2, %c0_12, %c0_13] : memref<3x144x400xbf16, #tpu.memory_space<vmem>>, vector<1x144x400xbf16>
    %23 = vector.shape_cast %22 : vector<1x144x400xbf16> to vector<144x400xbf16>
    %cst_14 = arith.constant dense<0.000000e+00> : vector<8x400xf32>
    %24 = tpu.matmul %14, %23, %cst_14 {dimension_numbers = #tpu.dot_dimension_numbers<[1], [0], [0], [1], [0, 0, 1, 1], [], []>} : vector<8x144xbf16>, vector<144x400xbf16>, vector<8x400xf32> -> vector<8x400xf32>
    %25 = arith.addf %21, %24 : vector<8x400xf32>
    %c0_15 = arith.constant 0 : index
    %c0_16 = arith.constant 0 : index
    %26 = vector.load %arg7[%c0_15, %c0_16] : memref<1x400xf32, #tpu.memory_space<vmem>>, vector<1x400xf32>
    %27 = vector.broadcast %26 : vector<1x400xf32> to vector<8x400xf32>
    %28 = arith.addf %25, %27 : vector<8x400xf32>
    %cst_17 = arith.constant dense<0.000000e+00> : vector<8xf32>
    %29 = vector.multi_reduction <add>, %28, %cst_17 [1] : vector<8x400xf32> to vector<8xf32>
    %30 = vector.shape_cast %29 : vector<8xf32> to vector<8x1xf32>
    %31 = arith.mulf %28, %28 : vector<8x400xf32>
    %cst_18 = arith.constant dense<0.000000e+00> : vector<8xf32>
    %32 = vector.multi_reduction <add>, %31, %cst_18 [1] : vector<8x400xf32> to vector<8xf32>
    %33 = vector.shape_cast %32 : vector<8xf32> to vector<8x1xf32>
    %c0_19 = arith.constant 0 : index
    %c0_20 = arith.constant 0 : index
    %34 = vector.load %arg5[%c0_19, %c0_20] : memref<8x8xf32, #tpu.memory_space<vmem>>, vector<8x8xf32>
    %35 = tpu.concatenate %30, %33 in 1 : vector<8x1xf32>, vector<8x1xf32> -> vector<8x2xf32>
    %cst_21 = arith.constant dense<0.000000e+00> : vector<8x2xf32>
    %36 = tpu.matmul %34, %35, %cst_21 {dimension_numbers = #tpu.dot_dimension_numbers<[1], [0], [0], [1], [0, 0, 1, 1], [], []>} : vector<8x8xf32>, vector<8x2xf32>, vector<8x2xf32> -> vector<8x2xf32>
    %37 = vector.extract_strided_slice %36 {offsets = [0, 0], sizes = [8, 1], strides = [1, 1]} : vector<8x2xf32> to vector<8x1xf32>
    %cst_22 = arith.constant 8.33333353E-4 : f32
    %38 = vector.broadcast %cst_22 : f32 to vector<8x1xf32>
    %39 = arith.mulf %37, %38 : vector<8x1xf32>
    %40 = vector.extract_strided_slice %36 {offsets = [0, 1], sizes = [8, 1], strides = [1, 1]} : vector<8x2xf32> to vector<8x1xf32>
    %cst_23 = arith.constant 8.33333353E-4 : f32
    %41 = vector.broadcast %cst_23 : f32 to vector<8x1xf32>
    %42 = arith.mulf %40, %41 : vector<8x1xf32>
    %43 = arith.mulf %39, %39 : vector<8x1xf32>
    %44 = arith.subf %42, %43 : vector<8x1xf32>
    %cst_24 = arith.constant 0.000000e+00 : f32
    %45 = vector.broadcast %cst_24 : f32 to vector<8x1xf32>
    %46 = arith.maximumf %44, %45 : vector<8x1xf32>
    %47 = vector.broadcast %39 : vector<8x1xf32> to vector<8x400xf32>
    %48 = arith.subf %28, %47 : vector<8x400xf32>
    %cst_25 = arith.constant 9.99999974E-6 : f32
    %49 = vector.broadcast %cst_25 : f32 to vector<8x1xf32>
    %50 = arith.addf %46, %49 : vector<8x1xf32>
    %51 = math.rsqrt %50 : vector<8x1xf32>
    %52 = vector.broadcast %51 : vector<8x1xf32> to vector<8x400xf32>
    %53 = arith.mulf %48, %52 : vector<8x400xf32>
    %c0_26 = arith.constant 0 : index
    %c0_27 = arith.constant 0 : index
    %54 = vector.load %arg8[%c0_26, %c0_27] : memref<1x400xf32, #tpu.memory_space<vmem>>, vector<1x400xf32>
    %55 = vector.broadcast %54 : vector<1x400xf32> to vector<8x400xf32>
    %56 = arith.mulf %53, %55 : vector<8x400xf32>
    %c0_28 = arith.constant 0 : index
    %c0_29 = arith.constant 0 : index
    %57 = vector.load %arg9[%c0_28, %c0_29] : memref<1x400xf32, #tpu.memory_space<vmem>>, vector<1x400xf32>
    %58 = vector.broadcast %57 : vector<1x400xf32> to vector<8x400xf32>
    %59 = arith.addf %56, %58 : vector<8x400xf32>
    %60 = arith.truncf %59 : vector<8x400xf32> to vector<8x400xbf16>
    %cst_30 = arith.constant 0.000000e+00 : bf16
    %61 = vector.broadcast %cst_30 : bf16 to vector<1x400xbf16>
    %62 = vector.extract_strided_slice %60 {offsets = [0, 0], sizes = [7, 400], strides = [1, 1]} : vector<8x400xbf16> to vector<7x400xbf16>
    %63 = tpu.concatenate %61, %62 in 0 : vector<1x400xbf16>, vector<7x400xbf16> -> vector<8x400xbf16>
    %64 = vector.broadcast %2 : vector<8x1xbf16> to vector<8x400xbf16>
    %65 = arith.mulf %63, %64 : vector<8x400xbf16>
    %66 = vector.extract_strided_slice %60 {offsets = [1, 0], sizes = [7, 400], strides = [1, 1]} : vector<8x400xbf16> to vector<7x400xbf16>
    %67 = tpu.concatenate %66, %61 in 0 : vector<7x400xbf16>, vector<1x400xbf16> -> vector<8x400xbf16>
    %68 = vector.broadcast %3 : vector<8x1xbf16> to vector<8x400xbf16>
    %69 = arith.mulf %67, %68 : vector<8x400xbf16>
    %c0_31 = arith.constant 0 : index
    %c0_32 = arith.constant 0 : index
    %c0_33 = arith.constant 0 : index
    %70 = vector.load %arg10[%c0_31, %c0_32, %c0_33] : memref<3x400x128xbf16, #tpu.memory_space<vmem>>, vector<1x400x128xbf16>
    %71 = vector.shape_cast %70 : vector<1x400x128xbf16> to vector<400x128xbf16>
    %cst_34 = arith.constant dense<0.000000e+00> : vector<8x128xf32>
    %72 = tpu.matmul %65, %71, %cst_34 {dimension_numbers = #tpu.dot_dimension_numbers<[1], [0], [0], [1], [0, 0, 1, 1], [], []>} : vector<8x400xbf16>, vector<400x128xbf16>, vector<8x128xf32> -> vector<8x128xf32>
    %c1_35 = arith.constant 1 : index
    %c0_36 = arith.constant 0 : index
    %c0_37 = arith.constant 0 : index
    %73 = vector.load %arg10[%c1_35, %c0_36, %c0_37] : memref<3x400x128xbf16, #tpu.memory_space<vmem>>, vector<1x400x128xbf16>
    %74 = vector.shape_cast %73 : vector<1x400x128xbf16> to vector<400x128xbf16>
    %cst_38 = arith.constant dense<0.000000e+00> : vector<8x128xf32>
    %75 = tpu.matmul %60, %74, %cst_38 {dimension_numbers = #tpu.dot_dimension_numbers<[1], [0], [0], [1], [0, 0, 1, 1], [], []>} : vector<8x400xbf16>, vector<400x128xbf16>, vector<8x128xf32> -> vector<8x128xf32>
    %76 = arith.addf %72, %75 : vector<8x128xf32>
    %c2_39 = arith.constant 2 : index
    %c0_40 = arith.constant 0 : index
    %c0_41 = arith.constant 0 : index
    %77 = vector.load %arg10[%c2_39, %c0_40, %c0_41] : memref<3x400x128xbf16, #tpu.memory_space<vmem>>, vector<1x400x128xbf16>
    %78 = vector.shape_cast %77 : vector<1x400x128xbf16> to vector<400x128xbf16>
    %cst_42 = arith.constant dense<0.000000e+00> : vector<8x128xf32>
    %79 = tpu.matmul %69, %78, %cst_42 {dimension_numbers = #tpu.dot_dimension_numbers<[1], [0], [0], [1], [0, 0, 1, 1], [], []>} : vector<8x400xbf16>, vector<400x128xbf16>, vector<8x128xf32> -> vector<8x128xf32>
    %80 = arith.addf %76, %79 : vector<8x128xf32>
    %c0_43 = arith.constant 0 : index
    %c0_44 = arith.constant 0 : index
    %81 = vector.load %arg11[%c0_43, %c0_44] : memref<1x128xf32, #tpu.memory_space<vmem>>, vector<1x128xf32>
    %82 = vector.broadcast %81 : vector<1x128xf32> to vector<8x128xf32>
    %83 = arith.addf %80, %82 : vector<8x128xf32>
    %c0_45 = arith.constant 0 : index
    %c0_46 = arith.constant 0 : index
    %84 = vector.load %arg2[%c0_45, %c0_46] : memref<8x32xf32, #tpu.memory_space<vmem>>, vector<8x32xf32>
    %cst_47 = arith.constant 0.000000e+00 : f32
    %85 = vector.broadcast %cst_47 : f32 to vector<1x16xf32>
    %cst_48 = arith.constant 0.000000e+00 : f32
    %86 = vector.broadcast %cst_48 : f32 to vector<8x16xf32>
    %87 = vector.extract_strided_slice %83 {offsets = [0, 0], sizes = [8, 32], strides = [1, 1]} : vector<8x128xf32> to vector<8x32xf32>
    %88 = vector.extract_strided_slice %83 {offsets = [0, 32], sizes = [8, 16], strides = [1, 1]} : vector<8x128xf32> to vector<8x16xf32>
    %89 = vector.extract_strided_slice %88 {offsets = [0, 0], sizes = [7, 16], strides = [1, 1]} : vector<8x16xf32> to vector<7x16xf32>
    %90 = tpu.concatenate %85, %89 in 0 : vector<1x16xf32>, vector<7x16xf32> -> vector<8x16xf32>
    %91 = vector.broadcast %0 : vector<8x1xf32> to vector<8x16xf32>
    %92 = arith.mulf %90, %91 : vector<8x16xf32>
    %93 = tpu.concatenate %92, %86 in 1 : vector<8x16xf32>, vector<8x16xf32> -> vector<8x32xf32>
    %94 = arith.addf %87, %93 : vector<8x32xf32>
    %95 = arith.mulf %94, %84 : vector<8x32xf32>
    %96 = vector.extract_strided_slice %83 {offsets = [0, 48], sizes = [8, 32], strides = [1, 1]} : vector<8x128xf32> to vector<8x32xf32>
    %97 = vector.extract_strided_slice %83 {offsets = [0, 80], sizes = [8, 16], strides = [1, 1]} : vector<8x128xf32> to vector<8x16xf32>
    %98 = vector.extract_strided_slice %97 {offsets = [0, 0], sizes = [7, 16], strides = [1, 1]} : vector<8x16xf32> to vector<7x16xf32>
    %99 = tpu.concatenate %85, %98 in 0 : vector<1x16xf32>, vector<7x16xf32> -> vector<8x16xf32>
    %100 = vector.broadcast %0 : vector<8x1xf32> to vector<8x16xf32>
    %101 = arith.mulf %99, %100 : vector<8x16xf32>
    %102 = tpu.concatenate %101, %86 in 1 : vector<8x16xf32>, vector<8x16xf32> -> vector<8x32xf32>
    %103 = arith.addf %96, %102 : vector<8x32xf32>
    %104 = arith.mulf %103, %84 : vector<8x32xf32>
    %105 = tpu.concatenate %95, %104 in 1 : vector<8x32xf32>, vector<8x32xf32> -> vector<8x64xf32>
    %c0_49 = arith.constant 0 : index
    %c0_50 = arith.constant 0 : index
    %106 = vector.load %arg12[%c0_49, %c0_50] : memref<8x64xf32, #tpu.memory_space<vmem>>, vector<8x64xf32>
    tpu.vector_store %arg12[%c0_49, %c0_50], %105 {strides = array<i32>} : memref<8x64xf32, #tpu.memory_space<vmem>>, vector<8x64xf32>,
    return
  }
  func.func @transform_0(%arg0: i32) -> (i32, i32) {
    %c0_i32 = arith.constant 0 : i32
    %c0_i32_0 = arith.constant 0 : i32
    return %arg0, %c0_i32 : i32, i32
  }
  func.func @transform_1(%arg0: i32) -> (i32, i32) {
    %c0_i32 = arith.constant 0 : i32
    %c0_i32_0 = arith.constant 0 : i32
    %c0_i32_1 = arith.constant 0 : i32
    return %c0_i32, %c0_i32_0 : i32, i32
  }
  func.func @transform_2(%arg0: i32) -> (i32, i32) {
    %c0_i32 = arith.constant 0 : i32
    %c0_i32_0 = arith.constant 0 : i32
    %c0_i32_1 = arith.constant 0 : i32
    return %c0_i32, %c0_i32_0 : i32, i32
  }
  func.func @transform_3(%arg0: i32) -> (i32, i32) {
    %c0_i32 = arith.constant 0 : i32
    %c0_i32_0 = arith.constant 0 : i32
    %c0_i32_1 = arith.constant 0 : i32
    return %c0_i32, %c0_i32_0 : i32, i32
  }
  func.func @transform_4(%arg0: i32) -> (i32, i32) {
    %c0_i32 = arith.constant 0 : i32
    %c0_i32_0 = arith.constant 0 : i32
    %c0_i32_1 = arith.constant 0 : i32
    return %c0_i32, %c0_i32_0 : i32, i32
  }
  func.func @transform_5(%arg0: i32) -> (i32, i32, i32) {
    %c0_i32 = arith.constant 0 : i32
    %c0_i32_0 = arith.constant 0 : i32
    %c0_i32_1 = arith.constant 0 : i32
    %c0_i32_2 = arith.constant 0 : i32
    return %c0_i32, %c0_i32_0, %c0_i32_1 : i32, i32, i32
  }
  func.func @transform_6(%arg0: i32) -> (i32, i32) {
    %c0_i32 = arith.constant 0 : i32
    %c0_i32_0 = arith.constant 0 : i32
    %c0_i32_1 = arith.constant 0 : i32
    return %c0_i32, %c0_i32_0 : i32, i32
  }
  func.func @transform_7(%arg0: i32) -> (i32, i32) {
    %c0_i32 = arith.constant 0 : i32
    %c0_i32_0 = arith.constant 0 : i32
    %c0_i32_1 = arith.constant 0 : i32
    return %c0_i32, %c0_i32_0 : i32, i32
  }
  func.func @transform_8(%arg0: i32) -> (i32, i32) {
    %c0_i32 = arith.constant 0 : i32
    %c0_i32_0 = arith.constant 0 : i32
    %c0_i32_1 = arith.constant 0 : i32
    return %c0_i32, %c0_i32_0 : i32, i32
  }
  func.func @transform_9(%arg0: i32) -> (i32, i32, i32) {
    %c0_i32 = arith.constant 0 : i32
    %c0_i32_0 = arith.constant 0 : i32
    %c0_i32_1 = arith.constant 0 : i32
    %c0_i32_2 = arith.constant 0 : i32
    return %c0_i32, %c0_i32_0, %c0_i32_1 : i32, i32, i32
  }
  func.func @transform_10(%arg0: i32) -> (i32, i32) {
    %c0_i32 = arith.constant 0 : i32
    %c0_i32_0 = arith.constant 0 : i32
    %c0_i32_1 = arith.constant 0 : i32
    return %c0_i32, %c0_i32_0 : i32, i32
  }
  func.func @transform_11(%arg0: i32) -> (i32, i32) {
    %c0_i32 = arith.constant 0 : i32
    %c0_i32_0 = arith.constant 0 : i32
    return %arg0, %c0_i32 : i32, i32
  }
}

</mosaic_0001>

<llo_original>
// kernel: tpu_custom_call.1
$region0: #{tpu_custom_call.1}
  #allocation0 [shape = 'u32[]', space=smem, size = 0x4, offset = 0x4, fixed_abs, tag = 'smem constant byte address 0x4 - core index']
  #allocation1 [shape = 'u32[144,128]{1,0:T(1,128)}', space=vmem, size = 0x12000, scoped, tag = 'internal scratch']
  %s0 = inlined_call_operand.hbm [shape: f32[16,144], index: 0, kind: input, shape index: {}]
  %s1 = inlined_call_operand.vmem [shape: f32[8,32], index: 1, kind: input, shape index: {}]
  %s2 = inlined_call_operand.vmem [shape: f32[8,1], index: 2, kind: input, shape index: {}]
  %s3 = inlined_call_operand.vmem [shape: f32[8,1], index: 3, kind: input, shape index: {}]
  %s4 = inlined_call_operand.vmem [shape: f32[8,8], index: 4, kind: input, shape index: {}]
  %s5 = inlined_call_operand.hbm [shape: bf16[3,144,400], index: 5, kind: input, shape index: {}]
  %s6 = inlined_call_operand.vmem [shape: f32[1,400], index: 6, kind: input, shape index: {}]
  %s7 = inlined_call_operand.vmem [shape: f32[1,400], index: 7, kind: input, shape index: {}]
  %s8 = inlined_call_operand.vmem [shape: f32[1,400], index: 8, kind: input, shape index: {}]
  %s9 = inlined_call_operand.hbm [shape: bf16[3,400,128], index: 9, kind: input, shape index: {}]
  %s10 = inlined_call_operand.vmem [shape: f32[1,128], index: 10, kind: input, shape index: {}]
  %s11 = inlined_call_operand.hbm [shape: f32[16,64], index: 11, kind: output, shape index: {}]
  %s12 = sld [smem:[#allocation0]]
  $region89: #{tpu_custom_call.1} parent=0
    _
  %s14 = ssub.s32 1, %s12
  %s15 = scalar_select 0, %s14, %s12
  $region1: #{tpu_custom_call.1} parent=0
    #allocation2 [shape = 'u8[16384]{0}', space=vmem, size = 0x4000, scoped, tag = 'input window, operand 0']
    #allocation3 [shape = 's32[2]{0}', space=sflag, size = 0x8, scoped, tag = 'scoped memory for tpu_custom_call.1']
    #allocation4 [shape = 's32[2]{0}', space=sflag, size = 0x8, scoped, tag = 'scoped memory for tpu_custom_call.1']
    #allocation5 [shape = 'u8[442368]{0}', space=vmem, size = 0x6c000, scoped, tag = 'input window, operand 5, single buffered']
    #allocation6 [shape = 's32[1]{0}', space=sflag, size = 0x4, scoped, tag = 'scoped memory for tpu_custom_call.1']
    #allocation7 [shape = 'u8[307200]{0}', space=vmem, size = 0x4b000, scoped, tag = 'input window, operand 9, single buffered']
    #allocation8 [shape = 'u8[8192]{0}', space=vmem, size = 0x2000, scoped, tag = 'output window, operand 0']
    %16 = vsyncpa [#allocation3], 0
    %s17 = scalar_lea.sflag [#allocation3], 1
    %18 = vsyncpa %s17, 0
    %19 = vsyncpa [#allocation6], 0
    %20 = vsyncpa [#allocation4], 0
    %s21 = scalar_lea.sflag [#allocation4], 1
    %22 = vsyncpa %s21, 0
    loop: start=0, step=1, limit=4
    $region2: #{tpu_custom_call.1} parent=1 // loop_pre_header
      _
    $region3: #{tpu_custom_call.1} parent=1 // loop_header
      %s24 = sphi 0, %s28
      %p25 = scmp.ge.s32.totalorder %s24, 4
      %s34 = sphi 0, %s36
      %s37 = sphi 0, %s34
      %s38 = sphi 0, %s37
      %s54 = sphi 0, %s38
      %s58 = sphi 0, %s58
      %s60 = sphi 0, %s58
      %s61 = sphi 0, %s60
      %s75 = sphi 0, %s61
      %s79 = sphi 0, %s79
      %s81 = sphi 0, %s79
      %s82 = sphi 0, %s81
      %s96 = sphi 0, %s82
      %s100 = sphi 0, %s100
      %s102 = sphi 0, %s100
      %s103 = sphi 0, %s102
      %s117 = sphi 0, %s103
      %s121 = sphi 0, %s121
      %s123 = sphi 0, %s121
      %s124 = sphi 0, %s123
      %s138 = sphi 0, %s124
      %s142 = sphi 0, %s142
      %s144 = sphi 0, %s142
      %s145 = sphi 0, %s144
      %s159 = sphi 0, %s145
      %s163 = sphi 0, %s163
      %s165 = sphi 0, %s163
      %s166 = sphi 0, %s165
      %s180 = sphi 0, %s166
      %s184 = sphi 0, %s184
      %s186 = sphi 0, %s184
      %s187 = sphi 0, %s186
      %s201 = sphi 0, %s187
      %s205 = sphi 0, %s205
      %s207 = sphi 0, %s205
      %s208 = sphi 0, %s207
      %s222 = sphi 0, %s208
      %s226 = sphi 0, %s226
      %s228 = sphi 0, %s226
      %s229 = sphi 0, %s228
      %s243 = sphi 0, %s229
      %s247 = sphi 0, %s247
      %s249 = sphi 0, %s247
      %s250 = sphi 0, %s249
      %s264 = sphi 0, %s250
      %s270 = sphi 0, %s272
      %s273 = sphi 0, %s270
      %s274 = sphi 0, %s273
      %s290 = sphi 0, %s274
    $region4: #{tpu_custom_call.1} parent=1 // loop_header_branch
      %27 = sbr.rel (%p25) target = $region8
    $region5: #{tpu_custom_call.1} parent=1 // loop_body
      %s29 = ssub.s32 %s24, 1
      %s30 = ssub.s32 %s24, 2
      %s31 = sadd.s32 %s24, 1
      %s32 = ssub.s32 %s24, %s31
      %p33 = scmp.eq.s32.totalorder %s32, 0
      %s35 = sadd.s32 %s34, 1
      %s36 = scalar_select %p33, %s34, %s35
      %p39 = pneg %p33
      %p40 = scmp.eq.s32.totalorder %s24, 1
      %p41 = por %p39, %p40
      %p42 = scmp.ne.s32.totalorder %s34, %s37
      %p43 = scmp.eq.s32.totalorder %s24, 0
      %p44 = por %p42, %p43
      %p45 = scmp.ne.s32.totalorder %s34, %s37
      %p46 = scmp.eq.s32.totalorder %s29, 1
      %p47 = por %p45, %p46
      %p48 = scmp.ne.s32.totalorder %s37, %s38
      %p49 = scmp.eq.s32.totalorder %s29, 0
      %p50 = por %p48, %p49
      %p51 = scmp.ne.s32.totalorder %s37, %s38
      %p52 = scmp.eq.s32.totalorder %s30, 1
      %p53 = por %p51, %p52
      %p55 = scmp.ne.s32.totalorder %s38, %s54
      %p56 = scmp.eq.s32.totalorder %s30, 0
      %p57 = por %p55, %p56
      %s59 = sadd.s32 %s58, 1
      %p62 = scmp.eq.s32.totalorder %s24, 1
      %p63 = scmp.ne.s32.totalorder %s58, %s60
      %p64 = scmp.eq.s32.totalorder %s24, 0
      %p65 = por %p63, %p64
      %p66 = scmp.ne.s32.totalorder %s58, %s60
      %p67 = scmp.eq.s32.totalorder %s29, 1
      %p68 = por %p66, %p67
      %p69 = scmp.ne.s32.totalorder %s60, %s61
      %p70 = scmp.eq.s32.totalorder %s29, 0
      %p71 = por %p69, %p70
      %p72 = scmp.ne.s32.totalorder %s60, %s61
      %p73 = scmp.eq.s32.totalorder %s30, 1
      %p74 = por %p72, %p73
      %p76 = scmp.ne.s32.totalorder %s61, %s75
      %p77 = scmp.eq.s32.totalorder %s30, 0
      %p78 = por %p76, %p77
      %s80 = sadd.s32 %s79, 1
      %p83 = scmp.eq.s32.totalorder %s24, 1
      %p84 = scmp.ne.s32.totalorder %s79, %s81
      %p85 = scmp.eq.s32.totalorder %s24, 0
      %p86 = por %p84, %p85
      %p87 = scmp.ne.s32.totalorder %s79, %s81
      %p88 = scmp.eq.s32.totalorder %s29, 1
      %p89 = por %p87, %p88
      %p90 = scmp.ne.s32.totalorder %s81, %s82
      %p91 = scmp.eq.s32.totalorder %s29, 0
      %p92 = por %p90, %p91
      %p93 = scmp.ne.s32.totalorder %s81, %s82
      %p94 = scmp.eq.s32.totalorder %s30, 1
      %p95 = por %p93, %p94
      %p97 = scmp.ne.s32.totalorder %s82, %s96
      %p98 = scmp.eq.s32.totalorder %s30, 0
      %p99 = por %p97, %p98
      %s101 = sadd.s32 %s100, 1
      %p104 = scmp.eq.s32.totalorder %s24, 1
      %p105 = scmp.ne.s32.totalorder %s100, %s102
      %p106 = scmp.eq.s32.totalorder %s24, 0
      %p107 = por %p105, %p106
      %p108 = scmp.ne.s32.totalorder %s100, %s102
      %p109 = scmp.eq.s32.totalorder %s29, 1
      %p110 = por %p108, %p109
      %p111 = scmp.ne.s32.totalorder %s102, %s103
      %p112 = scmp.eq.s32.totalorder %s29, 0
      %p113 = por %p111, %p112
      %p114 = scmp.ne.s32.totalorder %s102, %s103
      %p115 = scmp.eq.s32.totalorder %s30, 1
      %p116 = por %p114, %p115
      %p118 = scmp.ne.s32.totalorder %s103, %s117
      %p119 = scmp.eq.s32.totalorder %s30, 0
      %p120 = por %p118, %p119
      %s122 = sadd.s32 %s121, 1
      %p125 = scmp.eq.s32.totalorder %s24, 1
      %p126 = scmp.ne.s32.totalorder %s121, %s123
      %p127 = scmp.eq.s32.totalorder %s24, 0
      %p128 = por %p126, %p127
      %p129 = scmp.ne.s32.totalorder %s121, %s123
      %p130 = scmp.eq.s32.totalorder %s29, 1
      %p131 = por %p129, %p130
      %p132 = scmp.ne.s32.totalorder %s123, %s124
      %p133 = scmp.eq.s32.totalorder %s29, 0
      %p134 = por %p132, %p133
      %p135 = scmp.ne.s32.totalorder %s123, %s124
      %p136 = scmp.eq.s32.totalorder %s30, 1
      %p137 = por %p135, %p136
      %p139 = scmp.ne.s32.totalorder %s124, %s138
      %p140 = scmp.eq.s32.totalorder %s30, 0
      %p141 = por %p139, %p140
      %s143 = sadd.s32 %s142, 1
      %p146 = scmp.eq.s32.totalorder %s24, 1
      %p147 = scmp.ne.s32.totalorder %s142, %s144
      %p148 = scmp.eq.s32.totalorder %s24, 0
      %p149 = por %p147, %p148
      %p150 = scmp.ne.s32.totalorder %s142, %s144
      %p151 = scmp.eq.s32.totalorder %s29, 1
      %p152 = por %p150, %p151
      %p153 = scmp.ne.s32.totalorder %s144, %s145
      %p154 = scmp.eq.s32.totalorder %s29, 0
      %p155 = por %p153, %p154
      %p156 = scmp.ne.s32.totalorder %s144, %s145
      %p157 = scmp.eq.s32.totalorder %s30, 1
      %p158 = por %p156, %p157
      %p160 = scmp.ne.s32.totalorder %s145, %s159
      %p161 = scmp.eq.s32.totalorder %s30, 0
      %p162 = por %p160, %p161
      %s164 = sadd.s32 %s163, 1
      %p167 = scmp.eq.s32.totalorder %s24, 1
      %p168 = scmp.ne.s32.totalorder %s163, %s165
      %p169 = scmp.eq.s32.totalorder %s24, 0
      %p170 = por %p168, %p169
      %p171 = scmp.ne.s32.totalorder %s163, %s165
      %p172 = scmp.eq.s32.totalorder %s29, 1
      %p173 = por %p171, %p172
      %p174 = scmp.ne.s32.totalorder %s165, %s166
      %p175 = scmp.eq.s32.totalorder %s29, 0
      %p176 = por %p174, %p175
      %p177 = scmp.ne.s32.totalorder %s165, %s166
      %p178 = scmp.eq.s32.totalorder %s30, 1
      %p179 = por %p177, %p178
      %p181 = scmp.ne.s32.totalorder %s166, %s180
      %p182 = scmp.eq.s32.totalorder %s30, 0
      %p183 = por %p181, %p182
      %s185 = sadd.s32 %s184, 1
      %p188 = scmp.eq.s32.totalorder %s24, 1
      %p189 = scmp.ne.s32.totalorder %s184, %s186
      %p190 = scmp.eq.s32.totalorder %s24, 0
      %p191 = por %p189, %p190
      %p192 = scmp.ne.s32.totalorder %s184, %s186
      %p193 = scmp.eq.s32.totalorder %s29, 1
      %p194 = por %p192, %p193
      %p195 = scmp.ne.s32.totalorder %s186, %s187
      %p196 = scmp.eq.s32.totalorder %s29, 0
      %p197 = por %p195, %p196
      %p198 = scmp.ne.s32.totalorder %s186, %s187
      %p199 = scmp.eq.s32.totalorder %s30, 1
      %p200 = por %p198, %p199
      %p202 = scmp.ne.s32.totalorder %s187, %s201
      %p203 = scmp.eq.s32.totalorder %s30, 0
      %p204 = por %p202, %p203
      %s206 = sadd.s32 %s205, 1
      %p209 = scmp.eq.s32.totalorder %s24, 1
      %p210 = scmp.ne.s32.totalorder %s205, %s207
      %p211 = scmp.eq.s32.totalorder %s24, 0
      %p212 = por %p210, %p211
      %p213 = scmp.ne.s32.totalorder %s205, %s207
      %p214 = scmp.eq.s32.totalorder %s29, 1
      %p215 = por %p213, %p214
      %p216 = scmp.ne.s32.totalorder %s207, %s208
      %p217 = scmp.eq.s32.totalorder %s29, 0
      %p218 = por %p216, %p217
      %p219 = scmp.ne.s32.totalorder %s207, %s208
      %p220 = scmp.eq.s32.totalorder %s30, 1
      %p221 = por %p219, %p220
      %p223 = scmp.ne.s32.totalorder %s208, %s222
      %p224 = scmp.eq.s32.totalorder %s30, 0
      %p225 = por %p223, %p224
      %s227 = sadd.s32 %s226, 1
      %p230 = scmp.eq.s32.totalorder %s24, 1
      %p231 = scmp.ne.s32.totalorder %s226, %s228
      %p232 = scmp.eq.s32.totalorder %s24, 0
      %p233 = por %p231, %p232
      %p234 = scmp.ne.s32.totalorder %s226, %s228
      %p235 = scmp.eq.s32.totalorder %s29, 1
      %p236 = por %p234, %p235
      %p237 = scmp.ne.s32.totalorder %s228, %s229
      %p238 = scmp.eq.s32.totalorder %s29, 0
      %p239 = por %p237, %p238
      %p240 = scmp.ne.s32.totalorder %s228, %s229
      %p241 = scmp.eq.s32.totalorder %s30, 1
      %p242 = por %p240, %p241
      %p244 = scmp.ne.s32.totalorder %s229, %s243
      %p245 = scmp.eq.s32.totalorder %s30, 0
      %p246 = por %p244, %p245
      %s248 = sadd.s32 %s247, 1
      %p251 = scmp.eq.s32.totalorder %s24, 1
      %p252 = scmp.ne.s32.totalorder %s247, %s249
      %p253 = scmp.eq.s32.totalorder %s24, 0
      %p254 = por %p252, %p253
      %p255 = scmp.ne.s32.totalorder %s247, %s249
      %p256 = scmp.eq.s32.totalorder %s29, 1
      %p257 = por %p255, %p256
      %p258 = scmp.ne.s32.totalorder %s249, %s250
      %p259 = scmp.eq.s32.totalorder %s29, 0
      %p260 = por %p258, %p259
      %p261 = scmp.ne.s32.totalorder %s249, %s250
      %p262 = scmp.eq.s32.totalorder %s30, 1
      %p263 = por %p261, %p262
      %p265 = scmp.ne.s32.totalorder %s250, %s264
      %p266 = scmp.eq.s32.totalorder %s30, 0
      %p267 = por %p265, %p266
      %s268 = ssub.s32 %s24, %s31
      %p269 = scmp.eq.s32.totalorder %s268, 0
      %s271 = sadd.s32 %s270, 1
      %s272 = scalar_select %p269, %s270, %s271
      %p275 = pneg %p269
      %p276 = scmp.eq.s32.totalorder %s24, 1
      %p277 = por %p275, %p276
      %p278 = scmp.ne.s32.totalorder %s270, %s273
      %p279 = scmp.eq.s32.totalorder %s24, 0
      %p280 = por %p278, %p279
      %p281 = scmp.ne.s32.totalorder %s270, %s273
      %p282 = scmp.eq.s32.totalorder %s29, 1
      %p283 = por %p281, %p282
      %p284 = scmp.ne.s32.totalorder %s273, %s274
      %p285 = scmp.eq.s32.totalorder %s29, 0
      %p286 = por %p284, %p285
      %p287 = scmp.ne.s32.totalorder %s273, %s274
      %p288 = scmp.eq.s32.totalorder %s30, 1
      %p289 = por %p287, %p288
      %p291 = scmp.ne.s32.totalorder %s274, %s290
      %p292 = scmp.eq.s32.totalorder %s30, 0
      %p293 = por %p291, %p292
      %p294 = scmp.le.s32.totalorder 1, %s24
      %p295 = scmp.lt.s32.totalorder %s24, 3
      %p296 = pnand %p294, %p295
      %p297 = pneg %p296
      // Predicated region
      $region9: #{tpu_custom_call.1} parent=5 // pred_check
        _
      $region10: #{tpu_custom_call.1} parent=5 // pred_check_branch
        %299 = sbr.rel (%p296) target = $region12
      $region11: #{tpu_custom_call.1} parent=5 // pred_region
        %s300 = ssub.s32 %s24, 1
        // Predicated region
        $region13: #{tpu_custom_call.1} parent=11 // pred_check
          %p301 = pneg %p71
        $region14: #{tpu_custom_call.1} parent=11 // pred_check_branch
          %303 = sbr.rel (%p301) target = $region16
        $region15: #{tpu_custom_call.1} parent=11 // pred_region
          _
        $region16: #{tpu_custom_call.1} parent=11 // pred_fallthru
          _
        // Predicated region
        $region17: #{tpu_custom_call.1} parent=11 // pred_check
          %p304 = pneg %p92
        $region18: #{tpu_custom_call.1} parent=11 // pred_check_branch
          %306 = sbr.rel (%p304) target = $region20
        $region19: #{tpu_custom_call.1} parent=11 // pred_region
          _
        $region20: #{tpu_custom_call.1} parent=11 // pred_fallthru
          _
        // Predicated region
        $region21: #{tpu_custom_call.1} parent=11 // pred_check
          %p307 = pneg %p113
        $region22: #{tpu_custom_call.1} parent=11 // pred_check_branch
          %309 = sbr.rel (%p307) target = $region24
        $region23: #{tpu_custom_call.1} parent=11 // pred_region
          _
        $region24: #{tpu_custom_call.1} parent=11 // pred_fallthru
          _
        // Predicated region
        $region25: #{tpu_custom_call.1} parent=11 // pred_check
          %p310 = pneg %p134
        $region26: #{tpu_custom_call.1} parent=11 // pred_check_branch
          %312 = sbr.rel (%p310) target = $region28
        $region27: #{tpu_custom_call.1} parent=11 // pred_region
          _
        $region28: #{tpu_custom_call.1} parent=11 // pred_fallthru
          _
        // Predicated region
        $region29: #{tpu_custom_call.1} parent=11 // pred_check
          %p313 = pneg %p155
        $region30: #{tpu_custom_call.1} parent=11 // pred_check_branch
          %315 = sbr.rel (%p313) target = $region32
        $region31: #{tpu_custom_call.1} parent=11 // pred_region
          %s317 = ssub.s32 13824, 13824
          %318 = vsyncadd [#allocation6], %s317
          %s319 = sshll.u32 [#allocation5], 4
          %s320 = int_to_ptr.vmem [resolvable:$true] %s319
          %325 = dma.hbm_to_vmem [thread:$0]  %s5, 13824, %s320, [#allocation6], 256, 256, 16
        $region32: #{tpu_custom_call.1} parent=11 // pred_fallthru
          _
        // Predicated region
        $region33: #{tpu_custom_call.1} parent=11 // pred_check
          %p326 = pneg %p176
        $region34: #{tpu_custom_call.1} parent=11 // pred_check_branch
          %328 = sbr.rel (%p326) target = $region36
        $region35: #{tpu_custom_call.1} parent=11 // pred_region
          _
        $region36: #{tpu_custom_call.1} parent=11 // pred_fallthru
          _
        // Predicated region
        $region37: #{tpu_custom_call.1} parent=11 // pred_check
          %p329 = pneg %p197
        $region38: #{tpu_custom_call.1} parent=11 // pred_check_branch
          %331 = sbr.rel (%p329) target = $region40
        $region39: #{tpu_custom_call.1} parent=11 // pred_region
          _
        $region40: #{tpu_custom_call.1} parent=11 // pred_fallthru
          _
        // Predicated region
        $region41: #{tpu_custom_call.1} parent=11 // pred_check
          %p332 = pneg %p218
        $region42: #{tpu_custom_call.1} parent=11 // pred_check_branch
          %334 = sbr.rel (%p332) target = $region44
        $region43: #{tpu_custom_call.1} parent=11 // pred_region
          _
        $region44: #{tpu_custom_call.1} parent=11 // pred_fallthru
          _
        // Predicated region
        $region45: #{tpu_custom_call.1} parent=11 // pred_check
          %p335 = pneg %p239
        $region46: #{tpu_custom_call.1} parent=11 // pred_check_branch
          %337 = sbr.rel (%p335) target = $region48
        $region47: #{tpu_custom_call.1} parent=11 // pred_region
          %s339 = ssub.s32 9600, 9600
          %340 = vsyncadd [#allocation6], %s339
          %s341 = sshll.u32 [#allocation7], 4
          %s342 = int_to_ptr.vmem [resolvable:$true] %s341
          %347 = dma.hbm_to_vmem [thread:$0]  %s9, 9600, %s342, [#allocation6], 64, 64, 4
        $region48: #{tpu_custom_call.1} parent=11 // pred_fallthru
          _
        // Predicated region
        $region49: #{tpu_custom_call.1} parent=11 // pred_check
          %p348 = pneg %p260
        $region50: #{tpu_custom_call.1} parent=11 // pred_check_branch
          %350 = sbr.rel (%p348) target = $region52
        $region51: #{tpu_custom_call.1} parent=11 // pred_region
          _
        $region52: #{tpu_custom_call.1} parent=11 // pred_fallthru
          _
      $region12: #{tpu_custom_call.1} parent=5 // pred_fallthru
        _
      %p351 = scmp.lt.s32.totalorder %s24, 2
      // Predicated region
      $region53: #{tpu_custom_call.1} parent=5 // pred_check
        %p352 = pneg %p351
      $region54: #{tpu_custom_call.1} parent=5 // pred_check_branch
        %354 = sbr.rel (%p352) target = $region56
      $region55: #{tpu_custom_call.1} parent=5 // pred_region
        // Predicated region
        $region57: #{tpu_custom_call.1} parent=55 // pred_check
          %p355 = pneg %p44
        $region58: #{tpu_custom_call.1} parent=55 // pred_check_branch
          %357 = sbr.rel (%p355) target = $region60
        $region59: #{tpu_custom_call.1} parent=55 // pred_region
          %s358 = sand.u32 %s34, 1
          %s359 = scalar_lea.sflag [#allocation3], %s358
          %s360 = sand.u32 %s34, 1
          %s361 = smul.addr %s360, 16
          %s362 = scalar_lea.vmem [#allocation2], %s361
          %s364 = ssub.s32 256, 256
          %365 = vsyncadd %s359, %s364
          %s366 = smul.addr %s24, 2
          %s367 = smul.addr %s366, 128
          %s368 = scalar_lea.hbm %s0, %s367
          %s370 = sshll.u32 %s362, 4
          %s371 = int_to_ptr.vmem [resolvable:$true] %s370
          %373 = dma.hbm_to_vmem [thread:$0]  %s368, 256, %s371, %s359
        $region60: #{tpu_custom_call.1} parent=55 // pred_fallthru
          _
      $region56: #{tpu_custom_call.1} parent=5 // pred_fallthru
        _
      %p374 = scmp.le.s32.totalorder 1, %s24
      %p375 = scmp.lt.s32.totalorder %s24, 3
      %p376 = pnand %p374, %p375
      %p377 = pneg %p376
      // Predicated region
      $region61: #{tpu_custom_call.1} parent=5 // pred_check
        _
      $region62: #{tpu_custom_call.1} parent=5 // pred_check_branch
        %379 = sbr.rel (%p376) target = $region64
      $region63: #{tpu_custom_call.1} parent=5 // pred_region
        %s380 = ssub.s32 %s24, 1
        %s381 = sand.u32 %s37, 1
        %s382 = scalar_lea.sflag [#allocation3], %s381
        %s383 = sand.u32 %s37, 1
        %s384 = smul.addr %s383, 16
        %s385 = scalar_lea.vmem [#allocation2], %s384
        // Predicated region
        $region65: #{tpu_custom_call.1} parent=63 // pred_check
          %p386 = pneg %p50
        $region66: #{tpu_custom_call.1} parent=63 // pred_check_branch
          %388 = sbr.rel (%p386) target = $region68
        $region67: #{tpu_custom_call.1} parent=63 // pred_region
          %389 = dma.done %s382, 256
        $region68: #{tpu_custom_call.1} parent=63 // pred_fallthru
          _
        // Predicated region
        $region69: #{tpu_custom_call.1} parent=63 // pred_check
          %p390 = pneg %p155
        $region70: #{tpu_custom_call.1} parent=63 // pred_check_branch
          %392 = sbr.rel (%p390) target = $region72
        $region71: #{tpu_custom_call.1} parent=63 // pred_region
          %393 = dma.done [#allocation6], 13824
        $region72: #{tpu_custom_call.1} parent=63 // pred_fallthru
          _
        // Predicated region
        $region73: #{tpu_custom_call.1} parent=63 // pred_check
          %p394 = pneg %p239
        $region74: #{tpu_custom_call.1} parent=63 // pred_check_branch
          %396 = sbr.rel (%p394) target = $region76
        $region75: #{tpu_custom_call.1} parent=63 // pred_region
          %397 = dma.done [#allocation6], 9600
        $region76: #{tpu_custom_call.1} parent=63 // pred_fallthru
          _
        %s398 = sand.u32 %s37, 1
        %s399 = scalar_lea.sflag [#allocation3], %s398
        %s400 = sand.u32 %s37, 1
        %s401 = smul.addr %s400, 16
        %s402 = scalar_lea.vmem [#allocation2], %s401
        %p403 = pneg %p50
        %p404 = pneg %p47
        %p405 = pneg %p71
        %p406 = pneg %p68
        %p407 = pneg %p92
        %p408 = pneg %p89
        %p409 = pneg %p113
        %p410 = pneg %p110
        %p411 = pneg %p134
        %p412 = pneg %p131
        %p413 = pneg %p155
        %p414 = pneg %p152
        %p415 = pneg %p176
        %p416 = pneg %p173
        %p417 = pneg %p197
        %p418 = pneg %p194
        %p419 = pneg %p218
        %p420 = pneg %p215
        %p421 = pneg %p239
        %p422 = pneg %p236
        %p423 = pneg %p260
        %p424 = pneg %p257
        %p425 = pneg %p286
        %p426 = pneg %p283
        %s427 = sand.u32 %s273, 1
        %s428 = scalar_lea.sflag [#allocation4], %s427
        %s429 = sand.u32 %s273, 1
        %s430 = smul.addr %s429, 8
        %s431 = scalar_lea.vmem [#allocation8], %s430
        %v433 = vld [vmem:[%s2] sm:$0xff]
        %v434 = vld [vmem:[%s3] sm:$0xff]
        %v435 = vpack.c.bf16 %v433, %v433
        %v436 = vpack.c.bf16 %v434, %v434
        %v437 = vld [vmem:[%s385] sm:$0xff]
        %v438 = vld [vmem:[%s385 + $0x8] sm:$0xff]
        %v439 = vpack.c.bf16 %v437, %v437
        %v440 = vpack.c.bf16 %v438, %v438
        %v442 = vshrl.u32 %v439, 16
        %v444 = vrot.slane %v442, 7
        %v445 = vshll.u32 %v439, 16
        %v447 = vor.u32 %v444, %v445
        %v449 = vshrl.u32 %v440, 16
        %v451 = vrot.slane %v449, 7
        %v452 = vshll.u32 %v440, 16
        %v454 = vor.u32 %v451, %v452
        %vm457 = vcmask 1040384
        %vm458 = vsmask.f32 256
        %vm459 = vmand %vm457, %vm458
        %v460 = vsel %vm459, 0, %v447
        %v461 = vsel %vm459, 0, %v454
        %463 = vset.pattern.permute.xlu0 0
        %464 = vperm.xlu0 %463, %v435
        %v465 = vpop.permute.xlu0 %464
        %v467 = vmul.bf16 %v460, %v465
        %v468 = vmul.bf16 %v461, %v465
        %v469 = vrot.slane %v445, 1
        %v470 = vor.u32 %v442, %v469
        %v471 = vrot.slane %v452, 1
        %v472 = vor.u32 %v449, %v471
        %vm475 = vcmask 1043456
        %vm476 = vsmask.f32 3328
        %vm477 = vmand %vm475, %vm476
        %v478 = vsel %vm477, %v470, 0
        %v479 = vsel %vm477, %v472, 0
        %481 = vset.pattern.permute.xlu0 0
        %482 = vperm.xlu0 %481, %v436
        %v483 = vpop.permute.xlu0 %482
        %v485 = vmul.bf16 %v478, %v483
        %v486 = vmul.bf16 %v479, %v483
        %v487 = vld [vmem:[#allocation5] sm:$0xff]
        %v488 = vld [vmem:[#allocation5 + $0x8] sm:$0xff]
        %v489 = vld [vmem:[#allocation5 + $0x10] sm:$0xff]
        %v490 = vld [vmem:[#allocation5 + $0x18] sm:$0xff]
        %v491 = vld [vmem:[#allocation5 + $0x20] sm:$0xff]
        %v492 = vld [vmem:[#allocation5 + $0x28] sm:$0xff]
        %v493 = vld [vmem:[#allocation5 + $0x30] sm:$0xff]
        %v494 = vld [vmem:[#allocation5 + $0x38] sm:$0xff]
        %v495 = vld [vmem:[#allocation5 + $0x40] sm:$0xff]
        %v496 = vld [vmem:[#allocation5 + $0x48] sm:$0xff]
        %v497 = vld [vmem:[#allocation5 + $0x50] sm:$0xff]
        %v498 = vld [vmem:[#allocation5 + $0x58] sm:$0xff]
        %v499 = vld [vmem:[#allocation5 + $0x60] sm:$0xff]
        %v500 = vld [vmem:[#allocation5 + $0x68] sm:$0xff]
        %v501 = vld [vmem:[#allocation5 + $0x70] sm:$0xff]
        %v502 = vld [vmem:[#allocation5 + $0x78] sm:$0xff]
        %v503 = vld [vmem:[#allocation5 + $0x80] sm:$0xff]
        %v504 = vld [vmem:[#allocation5 + $0x88] sm:$0xff]
        %v505 = vld [vmem:[#allocation5 + $0x90] sm:$0xff]
        %v506 = vld [vmem:[#allocation5 + $0x98] sm:$0xff]
        %v507 = vld [vmem:[#allocation5 + $0xa0] sm:$0xff]
        %v508 = vld [vmem:[#allocation5 + $0xa8] sm:$0xff]
        %v509 = vld [vmem:[#allocation5 + $0xb0] sm:$0xff]
        %v510 = vld [vmem:[#allocation5 + $0xb8] sm:$0xff]
        %v511 = vld [vmem:[#allocation5 + $0xc0] sm:$0xff]
        %v512 = vld [vmem:[#allocation5 + $0xc8] sm:$0xff]
        %v513 = vld [vmem:[#allocation5 + $0xd0] sm:$0xff]
        %v514 = vld [vmem:[#allocation5 + $0xd8] sm:$0xff]
        %v515 = vld [vmem:[#allocation5 + $0xe0] sm:$0xff]
        %v516 = vld [vmem:[#allocation5 + $0xe8] sm:$0xff]
        %v517 = vld [vmem:[#allocation5 + $0xf0] sm:$0xff]
        %v518 = vld [vmem:[#allocation5 + $0xf8] sm:$0xff]
        %v519 = vld [vmem:[#allocation5 + $0x100] sm:$0xff]
        %v520 = vld [vmem:[#allocation5 + $0x108] sm:$0xff]
        %v521 = vld [vmem:[#allocation5 + $0x110] sm:$0xff]
        %v522 = vld [vmem:[#allocation5 + $0x118] sm:$0xff]
        %s523 = scalar_lea.vmem [#allocation5], 288
        %v524 = vld [vmem:[%s523] sm:$0xff]
        %v525 = vld [vmem:[%s523 + $0x8] sm:$0xff]
        %v526 = vld [vmem:[%s523 + $0x10] sm:$0xff]
        %v527 = vld [vmem:[%s523 + $0x18] sm:$0xff]
        %v528 = vld [vmem:[%s523 + $0x20] sm:$0xff]
        %v529 = vld [vmem:[%s523 + $0x28] sm:$0xff]
        %v530 = vld [vmem:[%s523 + $0x30] sm:$0xff]
        %v531 = vld [vmem:[%s523 + $0x38] sm:$0xff]
        %v532 = vld [vmem:[%s523 + $0x40] sm:$0xff]
        %v533 = vld [vmem:[%s523 + $0x48] sm:$0xff]
        %v534 = vld [vmem:[%s523 + $0x50] sm:$0xff]
        %v535 = vld [vmem:[%s523 + $0x58] sm:$0xff]
        %v536 = vld [vmem:[%s523 + $0x60] sm:$0xff]
        %v537 = vld [vmem:[%s523 + $0x68] sm:$0xff]
        %v538 = vld [vmem:[%s523 + $0x70] sm:$0xff]
        %v539 = vld [vmem:[%s523 + $0x78] sm:$0xff]
        %v540 = vld [vmem:[%s523 + $0x80] sm:$0xff]
        %v541 = vld [vmem:[%s523 + $0x88] sm:$0xff]
        %v542 = vld [vmem:[%s523 + $0x90] sm:$0xff]
        %v543 = vld [vmem:[%s523 + $0x98] sm:$0xff]
        %v544 = vld [vmem:[%s523 + $0xa0] sm:$0xff]
        %v545 = vld [vmem:[%s523 + $0xa8] sm:$0xff]
        %v546 = vld [vmem:[%s523 + $0xb0] sm:$0xff]
        %v547 = vld [vmem:[%s523 + $0xb8] sm:$0xff]
        %v548 = vld [vmem:[%s523 + $0xc0] sm:$0xff]
        %v549 = vld [vmem:[%s523 + $0xc8] sm:$0xff]
        %v550 = vld [vmem:[%s523 + $0xd0] sm:$0xff]
        %v551 = vld [vmem:[%s523 + $0xd8] sm:$0xff]
        %v552 = vld [vmem:[%s523 + $0xe0] sm:$0xff]
        %v553 = vld [vmem:[%s523 + $0xe8] sm:$0xff]
        %v554 = vld [vmem:[%s523 + $0xf0] sm:$0xff]
        %v555 = vld [vmem:[%s523 + $0xf8] sm:$0xff]
        %v556 = vld [vmem:[%s523 + $0x100] sm:$0xff]
        %v557 = vld [vmem:[%s523 + $0x108] sm:$0xff]
        %v558 = vld [vmem:[%s523 + $0x110] sm:$0xff]
        %v559 = vld [vmem:[%s523 + $0x118] sm:$0xff]
        %v596 = vunpack.c.l.b16 %v524
        %v597 = vunpack.c.h.b16 %v524
        %v598 = vunpack.c.l.b16 %v525
        %v599 = vunpack.c.h.b16 %v525
        %v600 = vunpack.c.l.b16 %v526
        %v601 = vunpack.c.h.b16 %v526
        %v602 = vunpack.c.l.b16 %v527
        %v603 = vunpack.c.h.b16 %v527
        %v604 = vunpack.c.l.b16 %v528
        %v605 = vunpack.c.h.b16 %v528
        %v606 = vunpack.c.l.b16 %v529
        %v607 = vunpack.c.h.b16 %v529
        %v608 = vunpack.c.l.b16 %v530
        %v609 = vunpack.c.h.b16 %v530
        %v610 = vunpack.c.l.b16 %v531
        %v611 = vunpack.c.h.b16 %v531
        %v612 = vunpack.c.l.b16 %v532
        %v613 = vunpack.c.h.b16 %v532
        %v614 = vunpack.c.l.b16 %v533
        %v615 = vunpack.c.h.b16 %v533
        %v616 = vunpack.c.l.b16 %v534
        %v617 = vunpack.c.h.b16 %v534
        %v618 = vunpack.c.l.b16 %v535
        %v619 = vunpack.c.h.b16 %v535
        %v620 = vunpack.c.l.b16 %v536
        %v621 = vunpack.c.h.b16 %v536
        %v622 = vunpack.c.l.b16 %v537
        %v623 = vunpack.c.h.b16 %v537
        %v624 = vunpack.c.l.b16 %v538
        %v625 = vunpack.c.h.b16 %v538
        %v626 = vunpack.c.l.b16 %v539
        %v627 = vunpack.c.h.b16 %v539
        %v628 = vunpack.c.l.b16 %v540
        %v629 = vunpack.c.h.b16 %v540
        %v630 = vunpack.c.l.b16 %v541
        %v631 = vunpack.c.h.b16 %v541
        %v632 = vunpack.c.l.b16 %v542
        %v633 = vunpack.c.h.b16 %v542
        %v634 = vunpack.c.l.b16 %v543
        %v635 = vunpack.c.h.b16 %v543
        %v636 = vunpack.c.l.b16 %v544
        %v637 = vunpack.c.h.b16 %v544
        %v638 = vunpack.c.l.b16 %v545
        %v639 = vunpack.c.h.b16 %v545
        %v640 = vunpack.c.l.b16 %v546
        %v641 = vunpack.c.h.b16 %v546
        %v642 = vunpack.c.l.b16 %v547
        %v643 = vunpack.c.h.b16 %v547
        %v644 = vunpack.c.l.b16 %v548
        %v645 = vunpack.c.h.b16 %v548
        %v646 = vunpack.c.l.b16 %v549
        %v647 = vunpack.c.h.b16 %v549
        %v648 = vunpack.c.l.b16 %v550
        %v649 = vunpack.c.h.b16 %v550
        %v650 = vunpack.c.l.b16 %v551
        %v651 = vunpack.c.h.b16 %v551
        %v652 = vunpack.c.l.b16 %v552
        %v653 = vunpack.c.h.b16 %v552
        %v654 = vunpack.c.l.b16 %v553
        %v655 = vunpack.c.h.b16 %v553
        %v656 = vunpack.c.l.b16 %v554
        %v657 = vunpack.c.h.b16 %v554
        %v658 = vunpack.c.l.b16 %v555
        %v659 = vunpack.c.h.b16 %v555
        %v660 = vunpack.c.l.b16 %v556
        %v661 = vunpack.c.h.b16 %v556
        %v662 = vunpack.c.l.b16 %v557
        %v663 = vunpack.c.h.b16 %v557
        %v664 = vunpack.c.l.b16 %v558
        %v665 = vunpack.c.h.b16 %v558
        %v666 = vunpack.c.l.b16 %v559
        %v667 = vunpack.c.h.b16 %v559
        %v668 = vpack.c.b16 %v600, %v596
        %v669 = vpack.c.b16 %v601, %v597
        %v670 = vpack.c.b16 %v602, %v598
        %v671 = vpack.c.b16 %v603, %v599
        %v672 = vpack.c.b16 %v608, %v604
        %v673 = vpack.c.b16 %v609, %v605
        %v674 = vpack.c.b16 %v610, %v606
        %v675 = vpack.c.b16 %v611, %v607
        %v676 = vpack.c.b16 %v616, %v612
        %v677 = vpack.c.b16 %v617, %v613
        %v678 = vpack.c.b16 %v618, %v614
        %v679 = vpack.c.b16 %v619, %v615
        %v680 = vpack.c.b16 %v624, %v620
        %v681 = vpack.c.b16 %v625, %v621
        %v682 = vpack.c.b16 %v626, %v622
        %v683 = vpack.c.b16 %v627, %v623
        %v684 = vpack.c.b16 %v632, %v628
        %v685 = vpack.c.b16 %v633, %v629
        %v686 = vpack.c.b16 %v634, %v630
        %v687 = vpack.c.b16 %v635, %v631
        %v688 = vpack.c.b16 %v640, %v636
        %v689 = vpack.c.b16 %v641, %v637
        %v690 = vpack.c.b16 %v642, %v638
        %v691 = vpack.c.b16 %v643, %v639
        %v692 = vpack.c.b16 %v648, %v644
        %v693 = vpack.c.b16 %v649, %v645
        %v694 = vpack.c.b16 %v650, %v646
        %v695 = vpack.c.b16 %v651, %v647
        %v696 = vpack.c.b16 %v656, %v652
        %v697 = vpack.c.b16 %v657, %v653
        %v698 = vpack.c.b16 %v658, %v654
        %v699 = vpack.c.b16 %v659, %v655
        %v700 = vpack.c.b16 %v664, %v660
        %v701 = vpack.c.b16 %v665, %v661
        %v702 = vpack.c.b16 %v666, %v662
        %v703 = vpack.c.b16 %v667, %v663
        %vm740 = vcmask 130048
        %v741 = vsel %vm740, %v440, 0
        %743 = vmatprep.subr.bf16.mxu0 %v697
        %744 = vmatpush1.bf16.msra.mxu0 %v696
        %745 = vmatprep.subr.bf16.mxu0 %v693
        %746 = vmatpush1.bf16.msra.mxu0 %v692
        %747 = vmatprep.subr.bf16.mxu0 %v689
        %748 = vmatpush1.bf16.msra.mxu0 %v688
        %749 = vmatprep.subr.bf16.mxu0 %v685
        %750 = vmatpush1.bf16.msra.mxu0 %v684
        %751 = vmatprep.subr.bf16.mxu0 %v681
        %752 = vmatpush1.bf16.msra.mxu0 %v680
        %753 = vmatprep.subr.bf16.mxu0 %v677
        %754 = vmatpush1.bf16.msra.mxu0 %v676
        %755 = vmatprep.subr.bf16.mxu0 %v673
        %756 = vmatpush1.bf16.msra.mxu0 %v672
        %757 = vmatprep.subr.bf16.mxu0 %v669
        %758 = vmatpush1.bf16.msra.mxu0 %v668
        %759 = vmatprep.subr.bf16.mxu0 0
        %760 = vmatpush2.bf16.msra.mxu0 0
        %761 = vmatprep.subr.bf16.mxu0 0
        %762 = vmatpush2.bf16.msra.mxu0 0
        %763 = vmatprep.subr.bf16.mxu0 0
        %764 = vmatpush2.bf16.msra.mxu0 0
        %765 = vmatprep.subr.bf16.mxu0 0
        %766 = vmatpush2.bf16.msra.mxu0 0
        %767 = vmatprep.subr.bf16.mxu0 0
        %768 = vmatpush2.bf16.msra.mxu0 0
        %769 = vmatprep.subr.bf16.mxu0 0
        %770 = vmatpush2.bf16.msra.mxu0 0
        %771 = vmatprep.subr.bf16.mxu0 0
        %772 = vmatpush2.bf16.msra.mxu0 0
        %773 = vmatprep.subr.bf16.mxu0 %v701
        %774 = vmatpush2.bf16.msra.mxu0 %v700
        %775 = vmatprep.mubr.bf16.mxu0 %v741
        %776 = vmatmul.mubr.bf16.gmra.mxu0 %v439
        %v777 = vpop.f32.mrf.mxu0
        %v778 = vadd.f32 0.0, %v777
        %v779 = vpop.f32.mrf.mxu0
        %v780 = vadd.f32 0.0, %v779
        %v781 = vpop.f32.mrf.mxu0
        %v782 = vpop.f32.mrf.mxu0
        %783 = vdwg.mxu0
        %784 = vmatprep.subr.bf16.mxu0 %v699
        %785 = vmatpush1.bf16.msra.mxu0 %v698
        %786 = vmatprep.subr.bf16.mxu0 %v695
        %787 = vmatpush1.bf16.msra.mxu0 %v694
        %788 = vmatprep.subr.bf16.mxu0 %v691
        %789 = vmatpush1.bf16.msra.mxu0 %v690
        %790 = vmatprep.subr.bf16.mxu0 %v687
        %791 = vmatpush1.bf16.msra.mxu0 %v686
        %792 = vmatprep.subr.bf16.mxu0 %v683
        %793 = vmatpush1.bf16.msra.mxu0 %v682
        %794 = vmatprep.subr.bf16.mxu0 %v679
        %795 = vmatpush1.bf16.msra.mxu0 %v678
        %796 = vmatprep.subr.bf16.mxu0 %v675
        %797 = vmatpush1.bf16.msra.mxu0 %v674
        %798 = vmatprep.subr.bf16.mxu0 %v671
        %799 = vmatpush1.bf16.msra.mxu0 %v670
        %800 = vmatprep.subr.bf16.mxu0 0
        %801 = vmatpush2.bf16.msra.mxu0 0
        %802 = vmatprep.subr.bf16.mxu0 0
        %803 = vmatpush2.bf16.msra.mxu0 0
        %804 = vmatprep.subr.bf16.mxu0 0
        %805 = vmatpush2.bf16.msra.mxu0 0
        %806 = vmatprep.subr.bf16.mxu0 0
        %807 = vmatpush2.bf16.msra.mxu0 0
        %808 = vmatprep.subr.bf16.mxu0 0
        %809 = vmatpush2.bf16.msra.mxu0 0
        %810 = vmatprep.subr.bf16.mxu0 0
        %811 = vmatpush2.bf16.msra.mxu0 0
        %812 = vmatprep.subr.bf16.mxu0 0
        %813 = vmatpush2.bf16.msra.mxu0 0
        %814 = vmatprep.subr.bf16.mxu0 %v703
        %815 = vmatpush2.bf16.msra.mxu0 %v702
        %816 = vmatprep.mubr.bf16.mxu0 %v741
        %817 = vmatmul.mubr.bf16.gmra.mxu0 %v439
        %v818 = vpop.f32.mrf.mxu0
        %v819 = vadd.f32 0.0, %v818
        %v820 = vpop.f32.mrf.mxu0
        %v821 = vadd.f32 0.0, %v820
        %v822 = vpop.f32.mrf.mxu0
        %v823 = vpop.f32.mrf.mxu0
        %824 = vdwg.mxu0
        %v861 = vunpack.c.l.b16 %v487
        %v862 = vunpack.c.h.b16 %v487
        %v863 = vunpack.c.l.b16 %v488
        %v864 = vunpack.c.h.b16 %v488
        %v865 = vunpack.c.l.b16 %v489
        %v866 = vunpack.c.h.b16 %v489
        %v867 = vunpack.c.l.b16 %v490
        %v868 = vunpack.c.h.b16 %v490
        %v869 = vunpack.c.l.b16 %v491
        %v870 = vunpack.c.h.b16 %v491
        %v871 = vunpack.c.l.b16 %v492
        %v872 = vunpack.c.h.b16 %v492
        %v873 = vunpack.c.l.b16 %v493
        %v874 = vunpack.c.h.b16 %v493
        %v875 = vunpack.c.l.b16 %v494
        %v876 = vunpack.c.h.b16 %v494
        %v877 = vunpack.c.l.b16 %v495
        %v878 = vunpack.c.h.b16 %v495
        %v879 = vunpack.c.l.b16 %v496
        %v880 = vunpack.c.h.b16 %v496
        %v881 = vunpack.c.l.b16 %v497
        %v882 = vunpack.c.h.b16 %v497
        %v883 = vunpack.c.l.b16 %v498
        %v884 = vunpack.c.h.b16 %v498
        %v885 = vunpack.c.l.b16 %v499
        %v886 = vunpack.c.h.b16 %v499
        %v887 = vunpack.c.l.b16 %v500
        %v888 = vunpack.c.h.b16 %v500
        %v889 = vunpack.c.l.b16 %v501
        %v890 = vunpack.c.h.b16 %v501
        %v891 = vunpack.c.l.b16 %v502
        %v892 = vunpack.c.h.b16 %v502
        %v893 = vunpack.c.l.b16 %v503
        %v894 = vunpack.c.h.b16 %v503
        %v895 = vunpack.c.l.b16 %v504
        %v896 = vunpack.c.h.b16 %v504
        %v897 = vunpack.c.l.b16 %v505
        %v898 = vunpack.c.h.b16 %v505
        %v899 = vunpack.c.l.b16 %v506
        %v900 = vunpack.c.h.b16 %v506
        %v901 = vunpack.c.l.b16 %v507
        %v902 = vunpack.c.h.b16 %v507
        %v903 = vunpack.c.l.b16 %v508
        %v904 = vunpack.c.h.b16 %v508
        %v905 = vunpack.c.l.b16 %v509
        %v906 = vunpack.c.h.b16 %v509
        %v907 = vunpack.c.l.b16 %v510
        %v908 = vunpack.c.h.b16 %v510
        %v909 = vunpack.c.l.b16 %v511
        %v910 = vunpack.c.h.b16 %v511
        %v911 = vunpack.c.l.b16 %v512
        %v912 = vunpack.c.h.b16 %v512
        %v913 = vunpack.c.l.b16 %v513
        %v914 = vunpack.c.h.b16 %v513
        %v915 = vunpack.c.l.b16 %v514
        %v916 = vunpack.c.h.b16 %v514
        %v917 = vunpack.c.l.b16 %v515
        %v918 = vunpack.c.h.b16 %v515
        %v919 = vunpack.c.l.b16 %v516
        %v920 = vunpack.c.h.b16 %v516
        %v921 = vunpack.c.l.b16 %v517
        %v922 = vunpack.c.h.b16 %v517
        %v923 = vunpack.c.l.b16 %v518
        %v924 = vunpack.c.h.b16 %v518
        %v925 = vunpack.c.l.b16 %v519
        %v926 = vunpack.c.h.b16 %v519
        %v927 = vunpack.c.l.b16 %v520
        %v928 = vunpack.c.h.b16 %v520
        %v929 = vunpack.c.l.b16 %v521
        %v930 = vunpack.c.h.b16 %v521
        %v931 = vunpack.c.l.b16 %v522
        %v932 = vunpack.c.h.b16 %v522
        %v933 = vpack.c.b16 %v865, %v861
        %v934 = vpack.c.b16 %v866, %v862
        %v935 = vpack.c.b16 %v867, %v863
        %v936 = vpack.c.b16 %v868, %v864
        %v937 = vpack.c.b16 %v873, %v869
        %v938 = vpack.c.b16 %v874, %v870
        %v939 = vpack.c.b16 %v875, %v871
        %v940 = vpack.c.b16 %v876, %v872
        %v941 = vpack.c.b16 %v881, %v877
        %v942 = vpack.c.b16 %v882, %v878
        %v943 = vpack.c.b16 %v883, %v879
        %v944 = vpack.c.b16 %v884, %v880
        %v945 = vpack.c.b16 %v889, %v885
        %v946 = vpack.c.b16 %v890, %v886
        %v947 = vpack.c.b16 %v891, %v887
        %v948 = vpack.c.b16 %v892, %v888
        %v949 = vpack.c.b16 %v897, %v893
        %v950 = vpack.c.b16 %v898, %v894
        %v951 = vpack.c.b16 %v899, %v895
        %v952 = vpack.c.b16 %v900, %v896
        %v953 = vpack.c.b16 %v905, %v901
        %v954 = vpack.c.b16 %v906, %v902
        %v955 = vpack.c.b16 %v907, %v903
        %v956 = vpack.c.b16 %v908, %v904
        %v957 = vpack.c.b16 %v913, %v909
        %v958 = vpack.c.b16 %v914, %v910
        %v959 = vpack.c.b16 %v915, %v911
        %v960 = vpack.c.b16 %v916, %v912
        %v961 = vpack.c.b16 %v921, %v917
        %v962 = vpack.c.b16 %v922, %v918
        %v963 = vpack.c.b16 %v923, %v919
        %v964 = vpack.c.b16 %v924, %v920
        %v965 = vpack.c.b16 %v929, %v925
        %v966 = vpack.c.b16 %v930, %v926
        %v967 = vpack.c.b16 %v931, %v927
        %v968 = vpack.c.b16 %v932, %v928
        %v1006 = vsel %vm740, %v468, 0
        %1008 = vmatprep.subr.bf16.mxu0 %v962
        %1009 = vmatpush1.bf16.msra.mxu0 %v961
        %1010 = vmatprep.subr.bf16.mxu0 %v958
        %1011 = vmatpush1.bf16.msra.mxu0 %v957
        %1012 = vmatprep.subr.bf16.mxu0 %v954
        %1013 = vmatpush1.bf16.msra.mxu0 %v953
        %1014 = vmatprep.subr.bf16.mxu0 %v950
        %1015 = vmatpush1.bf16.msra.mxu0 %v949
        %1016 = vmatprep.subr.bf16.mxu0 %v946
        %1017 = vmatpush1.bf16.msra.mxu0 %v945
        %1018 = vmatprep.subr.bf16.mxu0 %v942
        %1019 = vmatpush1.bf16.msra.mxu0 %v941
        %1020 = vmatprep.subr.bf16.mxu0 %v938
        %1021 = vmatpush1.bf16.msra.mxu0 %v937
        %1022 = vmatprep.subr.bf16.mxu0 %v934
        %1023 = vmatpush1.bf16.msra.mxu0 %v933
        %1024 = vmatprep.subr.bf16.mxu0 0
        %1025 = vmatpush2.bf16.msra.mxu0 0
        %1026 = vmatprep.subr.bf16.mxu0 0
        %1027 = vmatpush2.bf16.msra.mxu0 0
        %1028 = vmatprep.subr.bf16.mxu0 0
        %1029 = vmatpush2.bf16.msra.mxu0 0
        %1030 = vmatprep.subr.bf16.mxu0 0
        %1031 = vmatpush2.bf16.msra.mxu0 0
        %1032 = vmatprep.subr.bf16.mxu0 0
        %1033 = vmatpush2.bf16.msra.mxu0 0
        %1034 = vmatprep.subr.bf16.mxu0 0
        %1035 = vmatpush2.bf16.msra.mxu0 0
        %1036 = vmatprep.subr.bf16.mxu0 0
        %1037 = vmatpush2.bf16.msra.mxu0 0
        %1038 = vmatprep.subr.bf16.mxu0 %v966
        %1039 = vmatpush2.bf16.msra.mxu0 %v965
        %1040 = vmatprep.mubr.bf16.mxu0 %v1006
        %1041 = vmatmul.mubr.bf16.gmra.mxu0 %v467
        %v1042 = vpop.f32.mrf.mxu0
        %v1043 = vadd.f32 %v778, %v1042
        %v1044 = vpop.f32.mrf.mxu0
        %v1045 = vadd.f32 %v780, %v1044
        %v1046 = vpop.f32.mrf.mxu0
        %v1047 = vpop.f32.mrf.mxu0
        %1048 = vdwg.mxu0
        %1049 = vmatprep.subr.bf16.mxu0 %v964
        %1050 = vmatpush1.bf16.msra.mxu0 %v963
        %1051 = vmatprep.subr.bf16.mxu0 %v960
        %1052 = vmatpush1.bf16.msra.mxu0 %v959
        %1053 = vmatprep.subr.bf16.mxu0 %v956
        %1054 = vmatpush1.bf16.msra.mxu0 %v955
        %1055 = vmatprep.subr.bf16.mxu0 %v952
        %1056 = vmatpush1.bf16.msra.mxu0 %v951
        %1057 = vmatprep.subr.bf16.mxu0 %v948
        %1058 = vmatpush1.bf16.msra.mxu0 %v947
        %1059 = vmatprep.subr.bf16.mxu0 %v944
        %1060 = vmatpush1.bf16.msra.mxu0 %v943
        %1061 = vmatprep.subr.bf16.mxu0 %v940
        %1062 = vmatpush1.bf16.msra.mxu0 %v939
        %1063 = vmatprep.subr.bf16.mxu0 %v936
        %1064 = vmatpush1.bf16.msra.mxu0 %v935
        %1065 = vmatprep.subr.bf16.mxu0 0
        %1066 = vmatpush2.bf16.msra.mxu0 0
        %1067 = vmatprep.subr.bf16.mxu0 0
        %1068 = vmatpush2.bf16.msra.mxu0 0
        %1069 = vmatprep.subr.bf16.mxu0 0
        %1070 = vmatpush2.bf16.msra.mxu0 0
        %1071 = vmatprep.subr.bf16.mxu0 0
        %1072 = vmatpush2.bf16.msra.mxu0 0
        %1073 = vmatprep.subr.bf16.mxu0 0
        %1074 = vmatpush2.bf16.msra.mxu0 0
        %1075 = vmatprep.subr.bf16.mxu0 0
        %1076 = vmatpush2.bf16.msra.mxu0 0
        %1077 = vmatprep.subr.bf16.mxu0 0
        %1078 = vmatpush2.bf16.msra.mxu0 0
        %1079 = vmatprep.subr.bf16.mxu0 %v968
        %1080 = vmatpush2.bf16.msra.mxu0 %v967
        %1081 = vmatprep.mubr.bf16.mxu0 %v1006
        %1082 = vmatmul.mubr.bf16.gmra.mxu0 %v467
        %v1083 = vpop.f32.mrf.mxu0
        %v1084 = vadd.f32 %v819, %v1083
        %v1085 = vpop.f32.mrf.mxu0
        %v1086 = vadd.f32 %v821, %v1085
        %v1087 = vpop.f32.mrf.mxu0
        %v1088 = vpop.f32.mrf.mxu0
        %1089 = vdwg.mxu0
        %s1090 = scalar_lea.vmem [#allocation5], 576
        %v1091 = vld [vmem:[%s1090] sm:$0xff]
        %v1092 = vld [vmem:[%s1090 + $0x8] sm:$0xff]
        %v1093 = vld [vmem:[%s1090 + $0x10] sm:$0xff]
        %v1094 = vld [vmem:[%s1090 + $0x18] sm:$0xff]
        %v1095 = vld [vmem:[%s1090 + $0x20] sm:$0xff]
        %v1096 = vld [vmem:[%s1090 + $0x28] sm:$0xff]
        %v1097 = vld [vmem:[%s1090 + $0x30] sm:$0xff]
        %v1098 = vld [vmem:[%s1090 + $0x38] sm:$0xff]
        %v1099 = vld [vmem:[%s1090 + $0x40] sm:$0xff]
        %v1100 = vld [vmem:[%s1090 + $0x48] sm:$0xff]
        %v1101 = vld [vmem:[%s1090 + $0x50] sm:$0xff]
        %v1102 = vld [vmem:[%s1090 + $0x58] sm:$0xff]
        %v1103 = vld [vmem:[%s1090 + $0x60] sm:$0xff]
        %v1104 = vld [vmem:[%s1090 + $0x68] sm:$0xff]
        %v1105 = vld [vmem:[%s1090 + $0x70] sm:$0xff]
        %v1106 = vld [vmem:[%s1090 + $0x78] sm:$0xff]
        %v1107 = vld [vmem:[%s1090 + $0x80] sm:$0xff]
        %v1108 = vld [vmem:[%s1090 + $0x88] sm:$0xff]
        %v1109 = vld [vmem:[%s1090 + $0x90] sm:$0xff]
        %v1110 = vld [vmem:[%s1090 + $0x98] sm:$0xff]
        %v1111 = vld [vmem:[%s1090 + $0xa0] sm:$0xff]
        %v1112 = vld [vmem:[%s1090 + $0xa8] sm:$0xff]
        %v1113 = vld [vmem:[%s1090 + $0xb0] sm:$0xff]
        %v1114 = vld [vmem:[%s1090 + $0xb8] sm:$0xff]
        %v1115 = vld [vmem:[%s1090 + $0xc0] sm:$0xff]
        %v1116 = vld [vmem:[%s1090 + $0xc8] sm:$0xff]
        %v1117 = vld [vmem:[%s1090 + $0xd0] sm:$0xff]
        %v1118 = vld [vmem:[%s1090 + $0xd8] sm:$0xff]
        %v1119 = vld [vmem:[%s1090 + $0xe0] sm:$0xff]
        %v1120 = vld [vmem:[%s1090 + $0xe8] sm:$0xff]
        %v1121 = vld [vmem:[%s1090 + $0xf0] sm:$0xff]
        %v1122 = vld [vmem:[%s1090 + $0xf8] sm:$0xff]
        %v1123 = vld [vmem:[%s1090 + $0x100] sm:$0xff]
        %v1124 = vld [vmem:[%s1090 + $0x108] sm:$0xff]
        %v1125 = vld [vmem:[%s1090 + $0x110] sm:$0xff]
        %v1126 = vld [vmem:[%s1090 + $0x118] sm:$0xff]
        %v1163 = vunpack.c.l.b16 %v1091
        %v1164 = vunpack.c.h.b16 %v1091
        %v1165 = vunpack.c.l.b16 %v1092
        %v1166 = vunpack.c.h.b16 %v1092
        %v1167 = vunpack.c.l.b16 %v1093
        %v1168 = vunpack.c.h.b16 %v1093
        %v1169 = vunpack.c.l.b16 %v1094
        %v1170 = vunpack.c.h.b16 %v1094
        %v1171 = vunpack.c.l.b16 %v1095
        %v1172 = vunpack.c.h.b16 %v1095
        %v1173 = vunpack.c.l.b16 %v1096
        %v1174 = vunpack.c.h.b16 %v1096
        %v1175 = vunpack.c.l.b16 %v1097
        %v1176 = vunpack.c.h.b16 %v1097
        %v1177 = vunpack.c.l.b16 %v1098
        %v1178 = vunpack.c.h.b16 %v1098
        %v1179 = vunpack.c.l.b16 %v1099
        %v1180 = vunpack.c.h.b16 %v1099
        %v1181 = vunpack.c.l.b16 %v1100
        %v1182 = vunpack.c.h.b16 %v1100
        %v1183 = vunpack.c.l.b16 %v1101
        %v1184 = vunpack.c.h.b16 %v1101
        %v1185 = vunpack.c.l.b16 %v1102
        %v1186 = vunpack.c.h.b16 %v1102
        %v1187 = vunpack.c.l.b16 %v1103
        %v1188 = vunpack.c.h.b16 %v1103
        %v1189 = vunpack.c.l.b16 %v1104
        %v1190 = vunpack.c.h.b16 %v1104
        %v1191 = vunpack.c.l.b16 %v1105
        %v1192 = vunpack.c.h.b16 %v1105
        %v1193 = vunpack.c.l.b16 %v1106
        %v1194 = vunpack.c.h.b16 %v1106
        %v1195 = vunpack.c.l.b16 %v1107
        %v1196 = vunpack.c.h.b16 %v1107
        %v1197 = vunpack.c.l.b16 %v1108
        %v1198 = vunpack.c.h.b16 %v1108
        %v1199 = vunpack.c.l.b16 %v1109
        %v1200 = vunpack.c.h.b16 %v1109
        %v1201 = vunpack.c.l.b16 %v1110
        %v1202 = vunpack.c.h.b16 %v1110
        %v1203 = vunpack.c.l.b16 %v1111
        %v1204 = vunpack.c.h.b16 %v1111
        %v1205 = vunpack.c.l.b16 %v1112
        %v1206 = vunpack.c.h.b16 %v1112
        %v1207 = vunpack.c.l.b16 %v1113
        %v1208 = vunpack.c.h.b16 %v1113
        %v1209 = vunpack.c.l.b16 %v1114
        %v1210 = vunpack.c.h.b16 %v1114
        %v1211 = vunpack.c.l.b16 %v1115
        %v1212 = vunpack.c.h.b16 %v1115
        %v1213 = vunpack.c.l.b16 %v1116
        %v1214 = vunpack.c.h.b16 %v1116
        %v1215 = vunpack.c.l.b16 %v1117
        %v1216 = vunpack.c.h.b16 %v1117
        %v1217 = vunpack.c.l.b16 %v1118
        %v1218 = vunpack.c.h.b16 %v1118
        %v1219 = vunpack.c.l.b16 %v1119
        %v1220 = vunpack.c.h.b16 %v1119
        %v1221 = vunpack.c.l.b16 %v1120
        %v1222 = vunpack.c.h.b16 %v1120
        %v1223 = vunpack.c.l.b16 %v1121
        %v1224 = vunpack.c.h.b16 %v1121
        %v1225 = vunpack.c.l.b16 %v1122
        %v1226 = vunpack.c.h.b16 %v1122
        %v1227 = vunpack.c.l.b16 %v1123
        %v1228 = vunpack.c.h.b16 %v1123
        %v1229 = vunpack.c.l.b16 %v1124
        %v1230 = vunpack.c.h.b16 %v1124
        %v1231 = vunpack.c.l.b16 %v1125
        %v1232 = vunpack.c.h.b16 %v1125
        %v1233 = vunpack.c.l.b16 %v1126
        %v1234 = vunpack.c.h.b16 %v1126
        %v1235 = vpack.c.b16 %v1167, %v1163
        %v1236 = vpack.c.b16 %v1168, %v1164
        %v1237 = vpack.c.b16 %v1169, %v1165
        %v1238 = vpack.c.b16 %v1170, %v1166
        %v1239 = vpack.c.b16 %v1175, %v1171
        %v1240 = vpack.c.b16 %v1176, %v1172
        %v1241 = vpack.c.b16 %v1177, %v1173
        %v1242 = vpack.c.b16 %v1178, %v1174
        %v1243 = vpack.c.b16 %v1183, %v1179
        %v1244 = vpack.c.b16 %v1184, %v1180
        %v1245 = vpack.c.b16 %v1185, %v1181
        %v1246 = vpack.c.b16 %v1186, %v1182
        %v1247 = vpack.c.b16 %v1191, %v1187
        %v1248 = vpack.c.b16 %v1192, %v1188
        %v1249 = vpack.c.b16 %v1193, %v1189
        %v1250 = vpack.c.b16 %v1194, %v1190
        %v1251 = vpack.c.b16 %v1199, %v1195
        %v1252 = vpack.c.b16 %v1200, %v1196
        %v1253 = vpack.c.b16 %v1201, %v1197
        %v1254 = vpack.c.b16 %v1202, %v1198
        %v1255 = vpack.c.b16 %v1207, %v1203
        %v1256 = vpack.c.b16 %v1208, %v1204
        %v1257 = vpack.c.b16 %v1209, %v1205
        %v1258 = vpack.c.b16 %v1210, %v1206
        %v1259 = vpack.c.b16 %v1215, %v1211
        %v1260 = vpack.c.b16 %v1216, %v1212
        %v1261 = vpack.c.b16 %v1217, %v1213
        %v1262 = vpack.c.b16 %v1218, %v1214
        %v1263 = vpack.c.b16 %v1223, %v1219
        %v1264 = vpack.c.b16 %v1224, %v1220
        %v1265 = vpack.c.b16 %v1225, %v1221
        %v1266 = vpack.c.b16 %v1226, %v1222
        %v1267 = vpack.c.b16 %v1231, %v1227
        %v1268 = vpack.c.b16 %v1232, %v1228
        %v1269 = vpack.c.b16 %v1233, %v1229
        %v1270 = vpack.c.b16 %v1234, %v1230
        %v1308 = vsel %vm740, %v486, 0
        %1310 = vmatprep.subr.bf16.mxu0 %v1264
        %1311 = vmatpush1.bf16.msra.mxu0 %v1263
        %1312 = vmatprep.subr.bf16.mxu0 %v1260
        %1313 = vmatpush1.bf16.msra.mxu0 %v1259
        %1314 = vmatprep.subr.bf16.mxu0 %v1256
        %1315 = vmatpush1.bf16.msra.mxu0 %v1255
        %1316 = vmatprep.subr.bf16.mxu0 %v1252
        %1317 = vmatpush1.bf16.msra.mxu0 %v1251
        %1318 = vmatprep.subr.bf16.mxu0 %v1248
        %1319 = vmatpush1.bf16.msra.mxu0 %v1247
        %1320 = vmatprep.subr.bf16.mxu0 %v1244
        %1321 = vmatpush1.bf16.msra.mxu0 %v1243
        %1322 = vmatprep.subr.bf16.mxu0 %v1240
        %1323 = vmatpush1.bf16.msra.mxu0 %v1239
        %1324 = vmatprep.subr.bf16.mxu0 %v1236
        %1325 = vmatpush1.bf16.msra.mxu0 %v1235
        %1326 = vmatprep.subr.bf16.mxu0 0
        %1327 = vmatpush2.bf16.msra.mxu0 0
        %1328 = vmatprep.subr.bf16.mxu0 0
        %1329 = vmatpush2.bf16.msra.mxu0 0
        %1330 = vmatprep.subr.bf16.mxu0 0
        %1331 = vmatpush2.bf16.msra.mxu0 0
        %1332 = vmatprep.subr.bf16.mxu0 0
        %1333 = vmatpush2.bf16.msra.mxu0 0
        %1334 = vmatprep.subr.bf16.mxu0 0
        %1335 = vmatpush2.bf16.msra.mxu0 0
        %1336 = vmatprep.subr.bf16.mxu0 0
        %1337 = vmatpush2.bf16.msra.mxu0 0
        %1338 = vmatprep.subr.bf16.mxu0 0
        %1339 = vmatpush2.bf16.msra.mxu0 0
        %1340 = vmatprep.subr.bf16.mxu0 %v1268
        %1341 = vmatpush2.bf16.msra.mxu0 %v1267
        %1342 = vmatprep.mubr.bf16.mxu0 %v1308
        %1343 = vmatmul.mubr.bf16.gmra.mxu0 %v485
        %v1344 = vpop.f32.mrf.mxu0
        %v1345 = vadd.f32 0.0, %v1344
        %v1346 = vpop.f32.mrf.mxu0
        %v1347 = vadd.f32 0.0, %v1346
        %v1348 = vpop.f32.mrf.mxu0
        %v1349 = vpop.f32.mrf.mxu0
        %1350 = vdwg.mxu0
        %1351 = vmatprep.subr.bf16.mxu0 %v1266
        %1352 = vmatpush1.bf16.msra.mxu0 %v1265
        %1353 = vmatprep.subr.bf16.mxu0 %v1262
        %1354 = vmatpush1.bf16.msra.mxu0 %v1261
        %1355 = vmatprep.subr.bf16.mxu0 %v1258
        %1356 = vmatpush1.bf16.msra.mxu0 %v1257
        %1357 = vmatprep.subr.bf16.mxu0 %v1254
        %1358 = vmatpush1.bf16.msra.mxu0 %v1253
        %1359 = vmatprep.subr.bf16.mxu0 %v1250
        %1360 = vmatpush1.bf16.msra.mxu0 %v1249
        %1361 = vmatprep.subr.bf16.mxu0 %v1246
        %1362 = vmatpush1.bf16.msra.mxu0 %v1245
        %1363 = vmatprep.subr.bf16.mxu0 %v1242
        %1364 = vmatpush1.bf16.msra.mxu0 %v1241
        %1365 = vmatprep.subr.bf16.mxu0 %v1238
        %1366 = vmatpush1.bf16.msra.mxu0 %v1237
        %1367 = vmatprep.subr.bf16.mxu0 0
        %1368 = vmatpush2.bf16.msra.mxu0 0
        %1369 = vmatprep.subr.bf16.mxu0 0
        %1370 = vmatpush2.bf16.msra.mxu0 0
        %1371 = vmatprep.subr.bf16.mxu0 0
        %1372 = vmatpush2.bf16.msra.mxu0 0
        %1373 = vmatprep.subr.bf16.mxu0 0
        %1374 = vmatpush2.bf16.msra.mxu0 0
        %1375 = vmatprep.subr.bf16.mxu0 0
        %1376 = vmatpush2.bf16.msra.mxu0 0
        %1377 = vmatprep.subr.bf16.mxu0 0
        %1378 = vmatpush2.bf16.msra.mxu0 0
        %1379 = vmatprep.subr.bf16.mxu0 0
        %1380 = vmatpush2.bf16.msra.mxu0 0
        %1381 = vmatprep.subr.bf16.mxu0 %v1270
        %1382 = vmatpush2.bf16.msra.mxu0 %v1269
        %1383 = vmatprep.mubr.bf16.mxu0 %v1308
        %1384 = vmatmul.mubr.bf16.gmra.mxu0 %v485
        %v1385 = vpop.f32.mrf.mxu0
        %v1386 = vadd.f32 0.0, %v1385
        %v1387 = vpop.f32.mrf.mxu0
        %v1388 = vadd.f32 0.0, %v1387
        %v1389 = vpop.f32.mrf.mxu0
        %v1390 = vpop.f32.mrf.mxu0
        %1391 = vdwg.mxu0
        %v1392 = vadd.f32 %v1043, %v1345
        %v1393 = vadd.f32 %v1045, %v1347
        %v1394 = vadd.f32 %v1084, %v1386
        %v1395 = vadd.f32 %v1086, %v1388
        %v1396 = vld [vmem:[%s6] sm:$0xf]
        %v1398 = vlaneseq
        %v1399 = vshrl.u32 %v1398, 7
        %v1400 = vsub.s32 0, %v1399
        %v1401 = vrot.slane %v1396, %v1400
        %v1402 = vlaneseq
        %v1403 = vshrl.u32 %v1402, 7
        %v1404 = vsub.s32 1, %v1403
        %v1405 = vrot.slane %v1396, %v1404
        %v1406 = vlaneseq
        %v1407 = vshrl.u32 %v1406, 7
        %v1408 = vsub.s32 2, %v1407
        %v1409 = vrot.slane %v1396, %v1408
        %v1410 = vlaneseq
        %v1411 = vshrl.u32 %v1410, 7
        %v1412 = vsub.s32 3, %v1411
        %v1413 = vrot.slane %v1396, %v1412
        %v1418 = vadd.f32 %v1392, %v1401
        %v1419 = vadd.f32 %v1393, %v1405
        %v1420 = vadd.f32 %v1394, %v1409
        %v1421 = vadd.f32 %v1395, %v1413
        %v1422 = vadd.f32 %v1418, %v1419
        %v1423 = vadd.f32 %v1422, %v1420
        %v1424 = vsel %vm740, %v1421, 0.0
        %v1425 = vadd.f32 %v1423, %v1424
        %1426 = vadd.xlane.f32.xlu0 %v1425
        %v1427 = vpop.xlane.xlu0 %1426
        %v1428 = vmul.f32 %v1418, %v1418
        %v1429 = vmul.f32 %v1419, %v1419
        %v1430 = vmul.f32 %v1420, %v1420
        %v1431 = vmul.f32 %v1421, %v1421
        %v1432 = vadd.f32 %v1428, %v1429
        %v1433 = vadd.f32 %v1432, %v1430
        %v1434 = vsel %vm740, %v1431, 0.0
        %v1435 = vadd.f32 %v1433, %v1434
        %1436 = vadd.xlane.f32.xlu0 %v1435
        %v1437 = vpop.xlane.xlu0 %1436
        %v1438 = vld [vmem:[%s4] sm:$0xff]
        %vm1439 = vcmask 7168
        %v1440 = vsel %vm1439, %v1427, %v1437
        %vm1441 = vcmask 64512
        %v1443 = vsel %vm1441, %v1438, 0
        %1445 = vmatprep.subr.mxu0 0.0
        %1446 = vmatpush1.msra.mxu0 0.0
        %1447 = vmatprep.subr.mxu0 0.0
        %1448 = vmatpush1.msra.mxu0 0.0
        %1449 = vmatprep.subr.mxu0 0.0
        %1450 = vmatpush1.msra.mxu0 0.0
        %1451 = vmatprep.subr.mxu0 0.0
        %1452 = vmatpush1.msra.mxu0 0.0
        %1453 = vmatprep.subr.mxu0 0.0
        %1454 = vmatpush1.msra.mxu0 0.0
        %1455 = vmatprep.subr.mxu0 0.0
        %1456 = vmatpush1.msra.mxu0 0.0
        %1457 = vmatprep.subr.mxu0 0.0
        %1458 = vmatpush1.msra.mxu0 0.0
        %1459 = vmatprep.subr.mxu0 0.0
        %1460 = vmatpush1.msra.mxu0 0.0
        %1461 = vmatprep.subr.mxu0 0.0
        %1462 = vmatpush1.msra.mxu0 0.0
        %1463 = vmatprep.subr.mxu0 0.0
        %1464 = vmatpush1.msra.mxu0 0.0
        %1465 = vmatprep.subr.mxu0 0.0
        %1466 = vmatpush1.msra.mxu0 0.0
        %1467 = vmatprep.subr.mxu0 0.0
        %1468 = vmatpush1.msra.mxu0 0.0
        %1469 = vmatprep.subr.mxu0 0.0
        %1470 = vmatpush1.msra.mxu0 0.0
        %1471 = vmatprep.subr.mxu0 0.0
        %1472 = vmatpush1.msra.mxu0 0.0
        %1473 = vmatprep.subr.mxu0 0.0
        %1474 = vmatpush1.msra.mxu0 0.0
        %1475 = vmatprep.subr.mxu0 0.0
        %1476 = vmatpush1.msra.mxu0 %v1440
        %1477 = vmatprep.subr.mxu0 0.0
        %1478 = vmatpush2.msra.mxu0 0.0
        %1479 = vmatprep.subr.mxu0 0.0
        %1480 = vmatpush2.msra.mxu0 0.0
        %1481 = vmatprep.subr.mxu0 0.0
        %1482 = vmatpush2.msra.mxu0 0.0
        %1483 = vmatprep.subr.mxu0 0.0
        %1484 = vmatpush2.msra.mxu0 0.0
        %1485 = vmatprep.subr.mxu0 0.0
        %1486 = vmatpush2.msra.mxu0 0.0
        %1487 = vmatprep.subr.mxu0 0.0
        %1488 = vmatpush2.msra.mxu0 0.0
        %1489 = vmatprep.subr.mxu0 0.0
        %1490 = vmatpush2.msra.mxu0 0.0
        %1491 = vmatprep.subr.mxu0 0.0
        %1492 = vmatpush2.msra.mxu0 0.0
        %1493 = vmatprep.subr.mxu0 0.0
        %1494 = vmatpush2.msra.mxu0 0.0
        %1495 = vmatprep.subr.mxu0 0.0
        %1496 = vmatpush2.msra.mxu0 0.0
        %1497 = vmatprep.subr.mxu0 0.0
        %1498 = vmatpush2.msra.mxu0 0.0
        %1499 = vmatprep.subr.mxu0 0.0
        %1500 = vmatpush2.msra.mxu0 0.0
        %1501 = vmatprep.subr.mxu0 0.0
        %1502 = vmatpush2.msra.mxu0 0.0
        %1503 = vmatprep.subr.mxu0 0.0
        %1504 = vmatpush2.msra.mxu0 0.0
        %1505 = vmatprep.subr.mxu0 0.0
        %1506 = vmatpush2.msra.mxu0 0.0
        %1507 = vmatprep.subr.mxu0 0.0
        %1508 = vmatpush2.msra.mxu0 0.0
        %1509 = vmatprep.mubr.f32.mxu0 0.0
        %1510 = vmatmul.mubr.f32.gmra.mxu0 %v1443
        %v1511 = vpop.f32.mrf.mxu0
        %v1512 = vadd.f32 0.0, %v1511
        %v1513 = vpop.f32.mrf.mxu0
        %1514 = vdwg.mxu0
        %v1515 = vmul.f32 %v1512, 0.00083333335
        %v1516 = vmul.f32 %v1515, %v1515
        %1518 = vrot.lane.b32.xlu0 %v1516, 1
        %v1519 = vpop.permute.xlu0 %1518
        %v1521 = vsub.f32 %v1515, %v1519
        %v1522 = vmax.f32 %v1521, 0.0
        %1524 = vset.pattern.permute.xlu0 0
        %1525 = vperm.xlu0 %1524, %v1515
        %v1526 = vpop.permute.xlu0 %1525
        %v1528 = vsub.f32 %v1418, %v1526
        %v1529 = vsub.f32 %v1419, %v1526
        %v1530 = vsub.f32 %v1420, %v1526
        %v1531 = vsub.f32 %v1421, %v1526
        %v1532 = vadd.f32 %v1522, 1e-05
        %v1533 = vrsqrt.pop %v1532
        %1535 = vset.pattern.permute.xlu0 1
        %1536 = vperm.xlu0 %1535, %v1533
        %v1537 = vpop.permute.xlu0 %1536
        %v1539 = vmul.f32 %v1528, %v1537
        %v1540 = vmul.f32 %v1529, %v1537
        %v1541 = vmul.f32 %v1530, %v1537
        %v1542 = vmul.f32 %v1531, %v1537
        %v1543 = vld [vmem:[%s7] sm:$0xf]
        %v1545 = vlaneseq
        %v1546 = vshrl.u32 %v1545, 7
        %v1547 = vsub.s32 0, %v1546
        %v1548 = vrot.slane %v1543, %v1547
        %v1549 = vlaneseq
        %v1550 = vshrl.u32 %v1549, 7
        %v1551 = vsub.s32 1, %v1550
        %v1552 = vrot.slane %v1543, %v1551
        %v1553 = vlaneseq
        %v1554 = vshrl.u32 %v1553, 7
        %v1555 = vsub.s32 2, %v1554
        %v1556 = vrot.slane %v1543, %v1555
        %v1557 = vlaneseq
        %v1558 = vshrl.u32 %v1557, 7
        %v1559 = vsub.s32 3, %v1558
        %v1560 = vrot.slane %v1543, %v1559
        %v1565 = vmul.f32 %v1539, %v1548
        %v1566 = vmul.f32 %v1540, %v1552
        %v1567 = vmul.f32 %v1541, %v1556
        %v1568 = vmul.f32 %v1542, %v1560
        %v1569 = vld [vmem:[%s8] sm:$0xf]
        %v1571 = vlaneseq
        %v1572 = vshrl.u32 %v1571, 7
        %v1573 = vsub.s32 0, %v1572
        %v1574 = vrot.slane %v1569, %v1573
        %v1575 = vlaneseq
        %v1576 = vshrl.u32 %v1575, 7
        %v1577 = vsub.s32 1, %v1576
        %v1578 = vrot.slane %v1569, %v1577
        %v1579 = vlaneseq
        %v1580 = vshrl.u32 %v1579, 7
        %v1581 = vsub.s32 2, %v1580
        %v1582 = vrot.slane %v1569, %v1581
        %v1583 = vlaneseq
        %v1584 = vshrl.u32 %v1583, 7
        %v1585 = vsub.s32 3, %v1584
        %v1586 = vrot.slane %v1569, %v1585
        %v1591 = vadd.f32 %v1565, %v1574
        %v1592 = vadd.f32 %v1566, %v1578
        %v1593 = vadd.f32 %v1567, %v1582
        %v1594 = vadd.f32 %v1568, %v1586
        %v1595 = vpack.c.bf16 %v1591, %v1591
        %v1596 = vpack.c.bf16 %v1592, %v1592
        %v1597 = vpack.c.bf16 %v1593, %v1593
        %v1598 = vpack.c.bf16 %v1594, %v1594
        %v1600 = vshrl.u32 %v1595, 16
        %v1602 = vrot.slane %v1600, 7
        %v1603 = vshll.u32 %v1595, 16
        %v1605 = vor.u32 %v1602, %v1603
        %v1607 = vshrl.u32 %v1596, 16
        %v1609 = vrot.slane %v1607, 7
        %v1610 = vshll.u32 %v1596, 16
        %v1612 = vor.u32 %v1609, %v1610
        %v1614 = vshrl.u32 %v1597, 16
        %v1616 = vrot.slane %v1614, 7
        %v1617 = vshll.u32 %v1597, 16
        %v1619 = vor.u32 %v1616, %v1617
        %v1621 = vshrl.u32 %v1598, 16
        %v1623 = vrot.slane %v1621, 7
        %v1624 = vshll.u32 %v1598, 16
        %v1626 = vor.u32 %v1623, %v1624
        %v1631 = vsel %vm459, 0, %v1605
        %v1632 = vsel %vm459, 0, %v1612
        %v1633 = vsel %vm459, 0, %v1619
        %v1634 = vsel %vm459, 0, %v1626
        %v1635 = vmul.bf16 %v1631, %v465
        %v1636 = vmul.bf16 %v1632, %v465
        %v1637 = vmul.bf16 %v1633, %v465
        %v1638 = vmul.bf16 %v1634, %v465
        %v1639 = vrot.slane %v1603, 1
        %v1640 = vor.u32 %v1600, %v1639
        %v1641 = vrot.slane %v1610, 1
        %v1642 = vor.u32 %v1607, %v1641
        %v1643 = vrot.slane %v1617, 1
        %v1644 = vor.u32 %v1614, %v1643
        %v1645 = vrot.slane %v1624, 1
        %v1646 = vor.u32 %v1621, %v1645
        %v1651 = vsel %vm477, %v1640, 0
        %v1652 = vsel %vm477, %v1642, 0
        %v1653 = vsel %vm477, %v1644, 0
        %v1654 = vsel %vm477, %v1646, 0
        %v1655 = vmul.bf16 %v1651, %v483
        %v1656 = vmul.bf16 %v1652, %v483
        %v1657 = vmul.bf16 %v1653, %v483
        %v1658 = vmul.bf16 %v1654, %v483
        %v1659 = vld [vmem:[#allocation7] sm:$0xf]
        %v1660 = vld [vmem:[#allocation7 + $0x4] sm:$0xf]
        %v1661 = vld [vmem:[#allocation7 + $0x8] sm:$0xf]
        %v1662 = vld [vmem:[#allocation7 + $0xc] sm:$0xf]
        %v1663 = vld [vmem:[#allocation7 + $0x10] sm:$0xf]
        %v1664 = vld [vmem:[#allocation7 + $0x14] sm:$0xf]
        %v1665 = vld [vmem:[#allocation7 + $0x18] sm:$0xf]
        %v1666 = vld [vmem:[#allocation7 + $0x1c] sm:$0xf]
        %v1667 = vld [vmem:[#allocation7 + $0x20] sm:$0xf]
        %v1668 = vld [vmem:[#allocation7 + $0x24] sm:$0xf]
        %v1669 = vld [vmem:[#allocation7 + $0x28] sm:$0xf]
        %v1670 = vld [vmem:[#allocation7 + $0x2c] sm:$0xf]
        %v1671 = vld [vmem:[#allocation7 + $0x30] sm:$0xf]
        %v1672 = vld [vmem:[#allocation7 + $0x34] sm:$0xf]
        %v1673 = vld [vmem:[#allocation7 + $0x38] sm:$0xf]
        %v1674 = vld [vmem:[#allocation7 + $0x3c] sm:$0xf]
        %v1675 = vld [vmem:[#allocation7 + $0x40] sm:$0xf]
        %v1676 = vld [vmem:[#allocation7 + $0x44] sm:$0xf]
        %v1677 = vld [vmem:[#allocation7 + $0x48] sm:$0xf]
        %v1678 = vld [vmem:[#allocation7 + $0x4c] sm:$0xf]
        %v1679 = vld [vmem:[#allocation7 + $0x50] sm:$0xf]
        %v1680 = vld [vmem:[#allocation7 + $0x54] sm:$0xf]
        %v1681 = vld [vmem:[#allocation7 + $0x58] sm:$0xf]
        %v1682 = vld [vmem:[#allocation7 + $0x5c] sm:$0xf]
        %v1683 = vld [vmem:[#allocation7 + $0x60] sm:$0xf]
        %v1684 = vld [vmem:[#allocation7 + $0x64] sm:$0xf]
        %v1685 = vld [vmem:[#allocation7 + $0x68] sm:$0xf]
        %v1686 = vld [vmem:[#allocation7 + $0x6c] sm:$0xf]
        %v1687 = vld [vmem:[#allocation7 + $0x70] sm:$0xf]
        %v1688 = vld [vmem:[#allocation7 + $0x74] sm:$0xf]
        %v1689 = vld [vmem:[#allocation7 + $0x78] sm:$0xf]
        %v1690 = vld [vmem:[#allocation7 + $0x7c] sm:$0xf]
        %v1691 = vld [vmem:[#allocation7 + $0x80] sm:$0xf]
        %v1692 = vld [vmem:[#allocation7 + $0x84] sm:$0xf]
        %v1693 = vld [vmem:[#allocation7 + $0x88] sm:$0xf]
        %v1694 = vld [vmem:[#allocation7 + $0x8c] sm:$0xf]
        %v1695 = vld [vmem:[#allocation7 + $0x90] sm:$0xf]
        %v1696 = vld [vmem:[#allocation7 + $0x94] sm:$0xf]
        %v1697 = vld [vmem:[#allocation7 + $0x98] sm:$0xf]
        %v1698 = vld [vmem:[#allocation7 + $0x9c] sm:$0xf]
        %v1699 = vld [vmem:[#allocation7 + $0xa0] sm:$0xf]
        %v1700 = vld [vmem:[#allocation7 + $0xa4] sm:$0xf]
        %v1701 = vld [vmem:[#allocation7 + $0xa8] sm:$0xf]
        %v1702 = vld [vmem:[#allocation7 + $0xac] sm:$0xf]
        %v1703 = vld [vmem:[#allocation7 + $0xb0] sm:$0xf]
        %v1704 = vld [vmem:[#allocation7 + $0xb4] sm:$0xf]
        %v1705 = vld [vmem:[#allocation7 + $0xb8] sm:$0xf]
        %v1706 = vld [vmem:[#allocation7 + $0xbc] sm:$0xf]
        %v1707 = vld [vmem:[#allocation7 + $0xc0] sm:$0xf]
        %v1708 = vld [vmem:[#allocation7 + $0xc4] sm:$0xf]
        %s1709 = scalar_lea.vmem [#allocation7], 200
        %v1710 = vld [vmem:[%s1709] sm:$0xf]
        %v1711 = vld [vmem:[%s1709 + $0x4] sm:$0xf]
        %v1712 = vld [vmem:[%s1709 + $0x8] sm:$0xf]
        %v1713 = vld [vmem:[%s1709 + $0xc] sm:$0xf]
        %v1714 = vld [vmem:[%s1709 + $0x10] sm:$0xf]
        %v1715 = vld [vmem:[%s1709 + $0x14] sm:$0xf]
        %v1716 = vld [vmem:[%s1709 + $0x18] sm:$0xf]
        %v1717 = vld [vmem:[%s1709 + $0x1c] sm:$0xf]
        %v1718 = vld [vmem:[%s1709 + $0x20] sm:$0xf]
        %v1719 = vld [vmem:[%s1709 + $0x24] sm:$0xf]
        %v1720 = vld [vmem:[%s1709 + $0x28] sm:$0xf]
        %v1721 = vld [vmem:[%s1709 + $0x2c] sm:$0xf]
        %v1722 = vld [vmem:[%s1709 + $0x30] sm:$0xf]
        %v1723 = vld [vmem:[%s1709 + $0x34] sm:$0xf]
        %v1724 = vld [vmem:[%s1709 + $0x38] sm:$0xf]
        %v1725 = vld [vmem:[%s1709 + $0x3c] sm:$0xf]
        %v1726 = vld [vmem:[%s1709 + $0x40] sm:$0xf]
        %v1727 = vld [vmem:[%s1709 + $0x44] sm:$0xf]
        %v1728 = vld [vmem:[%s1709 + $0x48] sm:$0xf]
        %v1729 = vld [vmem:[%s1709 + $0x4c] sm:$0xf]
        %v1730 = vld [vmem:[%s1709 + $0x50] sm:$0xf]
        %v1731 = vld [vmem:[%s1709 + $0x54] sm:$0xf]
        %v1732 = vld [vmem:[%s1709 + $0x58] sm:$0xf]
        %v1733 = vld [vmem:[%s1709 + $0x5c] sm:$0xf]
        %v1734 = vld [vmem:[%s1709 + $0x60] sm:$0xf]
        %v1735 = vld [vmem:[%s1709 + $0x64] sm:$0xf]
        %v1736 = vld [vmem:[%s1709 + $0x68] sm:$0xf]
        %v1737 = vld [vmem:[%s1709 + $0x6c] sm:$0xf]
        %v1738 = vld [vmem:[%s1709 + $0x70] sm:$0xf]
        %v1739 = vld [vmem:[%s1709 + $0x74] sm:$0xf]
        %v1740 = vld [vmem:[%s1709 + $0x78] sm:$0xf]
        %v1741 = vld [vmem:[%s1709 + $0x7c] sm:$0xf]
        %v1742 = vld [vmem:[%s1709 + $0x80] sm:$0xf]
        %v1743 = vld [vmem:[%s1709 + $0x84] sm:$0xf]
        %v1744 = vld [vmem:[%s1709 + $0x88] sm:$0xf]
        %v1745 = vld [vmem:[%s1709 + $0x8c] sm:$0xf]
        %v1746 = vld [vmem:[%s1709 + $0x90] sm:$0xf]
        %v1747 = vld [vmem:[%s1709 + $0x94] sm:$0xf]
        %v1748 = vld [vmem:[%s1709 + $0x98] sm:$0xf]
        %v1749 = vld [vmem:[%s1709 + $0x9c] sm:$0xf]
        %v1750 = vld [vmem:[%s1709 + $0xa0] sm:$0xf]
        %v1751 = vld [vmem:[%s1709 + $0xa4] sm:$0xf]
        %v1752 = vld [vmem:[%s1709 + $0xa8] sm:$0xf]
        %v1753 = vld [vmem:[%s1709 + $0xac] sm:$0xf]
        %v1754 = vld [vmem:[%s1709 + $0xb0] sm:$0xf]
        %v1755 = vld [vmem:[%s1709 + $0xb4] sm:$0xf]
        %v1756 = vld [vmem:[%s1709 + $0xb8] sm:$0xf]
        %v1757 = vld [vmem:[%s1709 + $0xbc] sm:$0xf]
        %v1758 = vld [vmem:[%s1709 + $0xc0] sm:$0xf]
        %v1759 = vld [vmem:[%s1709 + $0xc4] sm:$0xf]
        %v1810 = vunpack.c.l.b16 %v1710
        %v1811 = vunpack.c.l.b16 %v1711
        %v1812 = vunpack.c.l.b16 %v1712
        %v1813 = vunpack.c.l.b16 %v1713
        %v1814 = vunpack.c.l.b16 %v1714
        %v1815 = vunpack.c.l.b16 %v1715
        %v1816 = vunpack.c.l.b16 %v1716
        %v1817 = vunpack.c.l.b16 %v1717
        %v1818 = vunpack.c.l.b16 %v1718
        %v1819 = vunpack.c.l.b16 %v1719
        %v1820 = vunpack.c.l.b16 %v1720
        %v1821 = vunpack.c.l.b16 %v1721
        %v1822 = vunpack.c.l.b16 %v1722
        %v1823 = vunpack.c.l.b16 %v1723
        %v1824 = vunpack.c.l.b16 %v1724
        %v1825 = vunpack.c.l.b16 %v1725
        %v1826 = vunpack.c.l.b16 %v1726
        %v1827 = vunpack.c.l.b16 %v1727
        %v1828 = vunpack.c.l.b16 %v1728
        %v1829 = vunpack.c.l.b16 %v1729
        %v1830 = vunpack.c.l.b16 %v1730
        %v1831 = vunpack.c.l.b16 %v1731
        %v1832 = vunpack.c.l.b16 %v1732
        %v1833 = vunpack.c.l.b16 %v1733
        %v1834 = vunpack.c.l.b16 %v1734
        %v1835 = vunpack.c.l.b16 %v1735
        %v1836 = vunpack.c.l.b16 %v1736
        %v1837 = vunpack.c.l.b16 %v1737
        %v1838 = vunpack.c.l.b16 %v1738
        %v1839 = vunpack.c.l.b16 %v1739
        %v1840 = vunpack.c.l.b16 %v1740
        %v1841 = vunpack.c.l.b16 %v1741
        %v1842 = vunpack.c.l.b16 %v1742
        %v1843 = vunpack.c.l.b16 %v1743
        %v1844 = vunpack.c.l.b16 %v1744
        %v1845 = vunpack.c.l.b16 %v1745
        %v1846 = vunpack.c.l.b16 %v1746
        %v1847 = vunpack.c.l.b16 %v1747
        %v1848 = vunpack.c.l.b16 %v1748
        %v1849 = vunpack.c.l.b16 %v1749
        %v1850 = vunpack.c.l.b16 %v1750
        %v1851 = vunpack.c.l.b16 %v1751
        %v1852 = vunpack.c.l.b16 %v1752
        %v1853 = vunpack.c.l.b16 %v1753
        %v1854 = vunpack.c.l.b16 %v1754
        %v1855 = vunpack.c.l.b16 %v1755
        %v1856 = vunpack.c.l.b16 %v1756
        %v1857 = vunpack.c.l.b16 %v1757
        %v1858 = vunpack.c.l.b16 %v1758
        %v1859 = vunpack.c.l.b16 %v1759
        %v1860 = vpack.c.b16 %v1811, %v1810
        %v1861 = vpack.c.b16 %v1813, %v1812
        %v1862 = vpack.c.b16 %v1815, %v1814
        %v1863 = vpack.c.b16 %v1817, %v1816
        %v1864 = vpack.c.b16 %v1819, %v1818
        %v1865 = vpack.c.b16 %v1821, %v1820
        %v1866 = vpack.c.b16 %v1823, %v1822
        %v1867 = vpack.c.b16 %v1825, %v1824
        %v1868 = vpack.c.b16 %v1827, %v1826
        %v1869 = vpack.c.b16 %v1829, %v1828
        %v1870 = vpack.c.b16 %v1831, %v1830
        %v1871 = vpack.c.b16 %v1833, %v1832
        %v1872 = vpack.c.b16 %v1835, %v1834
        %v1873 = vpack.c.b16 %v1837, %v1836
        %v1874 = vpack.c.b16 %v1839, %v1838
        %v1875 = vpack.c.b16 %v1841, %v1840
        %v1876 = vpack.c.b16 %v1843, %v1842
        %v1877 = vpack.c.b16 %v1845, %v1844
        %v1878 = vpack.c.b16 %v1847, %v1846
        %v1879 = vpack.c.b16 %v1849, %v1848
        %v1880 = vpack.c.b16 %v1851, %v1850
        %v1881 = vpack.c.b16 %v1853, %v1852
        %v1882 = vpack.c.b16 %v1855, %v1854
        %v1883 = vpack.c.b16 %v1857, %v1856
        %v1884 = vpack.c.b16 %v1859, %v1858
        %v1910 = vsel %vm740, %v1598, 0
        %1912 = vmatprep.subr.bf16.mxu0 0
        %1913 = vmatpush1.bf16.msra.mxu0 %v1867
        %1914 = vmatprep.subr.bf16.mxu0 0
        %1915 = vmatpush1.bf16.msra.mxu0 %v1866
        %1916 = vmatprep.subr.bf16.mxu0 0
        %1917 = vmatpush1.bf16.msra.mxu0 %v1865
        %1918 = vmatprep.subr.bf16.mxu0 0
        %1919 = vmatpush1.bf16.msra.mxu0 %v1864
        %1920 = vmatprep.subr.bf16.mxu0 0
        %1921 = vmatpush1.bf16.msra.mxu0 %v1863
        %1922 = vmatprep.subr.bf16.mxu0 0
        %1923 = vmatpush1.bf16.msra.mxu0 %v1862
        %1924 = vmatprep.subr.bf16.mxu0 0
        %1925 = vmatpush1.bf16.msra.mxu0 %v1861
        %1926 = vmatprep.subr.bf16.mxu0 0
        %1927 = vmatpush1.bf16.msra.mxu0 %v1860
        %1928 = vmatprep.subr.bf16.mxu0 0
        %1929 = vmatpush2.bf16.msra.mxu0 %v1875
        %1930 = vmatprep.subr.bf16.mxu0 0
        %1931 = vmatpush2.bf16.msra.mxu0 %v1874
        %1932 = vmatprep.subr.bf16.mxu0 0
        %1933 = vmatpush2.bf16.msra.mxu0 %v1873
        %1934 = vmatprep.subr.bf16.mxu0 0
        %1935 = vmatpush2.bf16.msra.mxu0 %v1872
        %1936 = vmatprep.subr.bf16.mxu0 0
        %1937 = vmatpush2.bf16.msra.mxu0 %v1871
        %1938 = vmatprep.subr.bf16.mxu0 0
        %1939 = vmatpush2.bf16.msra.mxu0 %v1870
        %1940 = vmatprep.subr.bf16.mxu0 0
        %1941 = vmatpush2.bf16.msra.mxu0 %v1869
        %1942 = vmatprep.subr.bf16.mxu0 0
        %1943 = vmatpush2.bf16.msra.mxu0 %v1868
        %1944 = vmatprep.mubr.bf16.mxu0 %v1596
        %1945 = vmatmul.mubr.bf16.gmra.mxu0 %v1595
        %v1946 = vpop.f32.mrf.mxu0
        %v1947 = vadd.f32 0.0, %v1946
        %v1948 = vpop.f32.mrf.mxu0
        %v1949 = vpop.f32.mrf.mxu0
        %v1950 = vpop.f32.mrf.mxu0
        %1951 = vdwg.mxu0
        %1952 = vmatprep.subr.bf16.mxu0 0
        %1953 = vmatpush1.bf16.msra.mxu0 %v1883
        %1954 = vmatprep.subr.bf16.mxu0 0
        %1955 = vmatpush1.bf16.msra.mxu0 %v1882
        %1956 = vmatprep.subr.bf16.mxu0 0
        %1957 = vmatpush1.bf16.msra.mxu0 %v1881
        %1958 = vmatprep.subr.bf16.mxu0 0
        %1959 = vmatpush1.bf16.msra.mxu0 %v1880
        %1960 = vmatprep.subr.bf16.mxu0 0
        %1961 = vmatpush1.bf16.msra.mxu0 %v1879
        %1962 = vmatprep.subr.bf16.mxu0 0
        %1963 = vmatpush1.bf16.msra.mxu0 %v1878
        %1964 = vmatprep.subr.bf16.mxu0 0
        %1965 = vmatpush1.bf16.msra.mxu0 %v1877
        %1966 = vmatprep.subr.bf16.mxu0 0
        %1967 = vmatpush1.bf16.msra.mxu0 %v1876
        %1968 = vmatprep.subr.bf16.mxu0 0
        %1969 = vmatpush2.bf16.msra.mxu0 0
        %1970 = vmatprep.subr.bf16.mxu0 0
        %1971 = vmatpush2.bf16.msra.mxu0 0
        %1972 = vmatprep.subr.bf16.mxu0 0
        %1973 = vmatpush2.bf16.msra.mxu0 0
        %1974 = vmatprep.subr.bf16.mxu0 0
        %1975 = vmatpush2.bf16.msra.mxu0 0
        %1976 = vmatprep.subr.bf16.mxu0 0
        %1977 = vmatpush2.bf16.msra.mxu0 0
        %1978 = vmatprep.subr.bf16.mxu0 0
        %1979 = vmatpush2.bf16.msra.mxu0 0
        %1980 = vmatprep.subr.bf16.mxu0 0
        %1981 = vmatpush2.bf16.msra.mxu0 0
        %1982 = vmatprep.subr.bf16.mxu0 0
        %1983 = vmatpush2.bf16.msra.mxu0 %v1884
        %1984 = vmatprep.mubr.bf16.mxu0 %v1910
        %1985 = vmatmul.mubr.bf16.gmra.mxu0 %v1597
        %v1986 = vpop.f32.mrf.mxu0
        %v1987 = vadd.f32 %v1947, %v1986
        %v1988 = vpop.f32.mrf.mxu0
        %v1989 = vpop.f32.mrf.mxu0
        %v1990 = vpop.f32.mrf.mxu0
        %1991 = vdwg.mxu0
        %v2042 = vunpack.c.l.b16 %v1659
        %v2043 = vunpack.c.l.b16 %v1660
        %v2044 = vunpack.c.l.b16 %v1661
        %v2045 = vunpack.c.l.b16 %v1662
        %v2046 = vunpack.c.l.b16 %v1663
        %v2047 = vunpack.c.l.b16 %v1664
        %v2048 = vunpack.c.l.b16 %v1665
        %v2049 = vunpack.c.l.b16 %v1666
        %v2050 = vunpack.c.l.b16 %v1667
        %v2051 = vunpack.c.l.b16 %v1668
        %v2052 = vunpack.c.l.b16 %v1669
        %v2053 = vunpack.c.l.b16 %v1670
        %v2054 = vunpack.c.l.b16 %v1671
        %v2055 = vunpack.c.l.b16 %v1672
        %v2056 = vunpack.c.l.b16 %v1673
        %v2057 = vunpack.c.l.b16 %v1674
        %v2058 = vunpack.c.l.b16 %v1675
        %v2059 = vunpack.c.l.b16 %v1676
        %v2060 = vunpack.c.l.b16 %v1677
        %v2061 = vunpack.c.l.b16 %v1678
        %v2062 = vunpack.c.l.b16 %v1679
        %v2063 = vunpack.c.l.b16 %v1680
        %v2064 = vunpack.c.l.b16 %v1681
        %v2065 = vunpack.c.l.b16 %v1682
        %v2066 = vunpack.c.l.b16 %v1683
        %v2067 = vunpack.c.l.b16 %v1684
        %v2068 = vunpack.c.l.b16 %v1685
        %v2069 = vunpack.c.l.b16 %v1686
        %v2070 = vunpack.c.l.b16 %v1687
        %v2071 = vunpack.c.l.b16 %v1688
        %v2072 = vunpack.c.l.b16 %v1689
        %v2073 = vunpack.c.l.b16 %v1690
        %v2074 = vunpack.c.l.b16 %v1691
        %v2075 = vunpack.c.l.b16 %v1692
        %v2076 = vunpack.c.l.b16 %v1693
        %v2077 = vunpack.c.l.b16 %v1694
        %v2078 = vunpack.c.l.b16 %v1695
        %v2079 = vunpack.c.l.b16 %v1696
        %v2080 = vunpack.c.l.b16 %v1697
        %v2081 = vunpack.c.l.b16 %v1698
        %v2082 = vunpack.c.l.b16 %v1699
        %v2083 = vunpack.c.l.b16 %v1700
        %v2084 = vunpack.c.l.b16 %v1701
        %v2085 = vunpack.c.l.b16 %v1702
        %v2086 = vunpack.c.l.b16 %v1703
        %v2087 = vunpack.c.l.b16 %v1704
        %v2088 = vunpack.c.l.b16 %v1705
        %v2089 = vunpack.c.l.b16 %v1706
        %v2090 = vunpack.c.l.b16 %v1707
        %v2091 = vunpack.c.l.b16 %v1708
        %v2092 = vpack.c.b16 %v2043, %v2042
        %v2093 = vpack.c.b16 %v2045, %v2044
        %v2094 = vpack.c.b16 %v2047, %v2046
        %v2095 = vpack.c.b16 %v2049, %v2048
        %v2096 = vpack.c.b16 %v2051, %v2050
        %v2097 = vpack.c.b16 %v2053, %v2052
        %v2098 = vpack.c.b16 %v2055, %v2054
        %v2099 = vpack.c.b16 %v2057, %v2056
        %v2100 = vpack.c.b16 %v2059, %v2058
        %v2101 = vpack.c.b16 %v2061, %v2060
        %v2102 = vpack.c.b16 %v2063, %v2062
        %v2103 = vpack.c.b16 %v2065, %v2064
        %v2104 = vpack.c.b16 %v2067, %v2066
        %v2105 = vpack.c.b16 %v2069, %v2068
        %v2106 = vpack.c.b16 %v2071, %v2070
        %v2107 = vpack.c.b16 %v2073, %v2072
        %v2108 = vpack.c.b16 %v2075, %v2074
        %v2109 = vpack.c.b16 %v2077, %v2076
        %v2110 = vpack.c.b16 %v2079, %v2078
        %v2111 = vpack.c.b16 %v2081, %v2080
        %v2112 = vpack.c.b16 %v2083, %v2082
        %v2113 = vpack.c.b16 %v2085, %v2084
        %v2114 = vpack.c.b16 %v2087, %v2086
        %v2115 = vpack.c.b16 %v2089, %v2088
        %v2116 = vpack.c.b16 %v2091, %v2090
        %v2143 = vsel %vm740, %v1638, 0
        %2145 = vmatprep.subr.bf16.mxu0 0
        %2146 = vmatpush1.bf16.msra.mxu0 %v2099
        %2147 = vmatprep.subr.bf16.mxu0 0
        %2148 = vmatpush1.bf16.msra.mxu0 %v2098
        %2149 = vmatprep.subr.bf16.mxu0 0
        %2150 = vmatpush1.bf16.msra.mxu0 %v2097
        %2151 = vmatprep.subr.bf16.mxu0 0
        %2152 = vmatpush1.bf16.msra.mxu0 %v2096
        %2153 = vmatprep.subr.bf16.mxu0 0
        %2154 = vmatpush1.bf16.msra.mxu0 %v2095
        %2155 = vmatprep.subr.bf16.mxu0 0
        %2156 = vmatpush1.bf16.msra.mxu0 %v2094
        %2157 = vmatprep.subr.bf16.mxu0 0
        %2158 = vmatpush1.bf16.msra.mxu0 %v2093
        %2159 = vmatprep.subr.bf16.mxu0 0
        %2160 = vmatpush1.bf16.msra.mxu0 %v2092
        %2161 = vmatprep.subr.bf16.mxu0 0
        %2162 = vmatpush2.bf16.msra.mxu0 %v2107
        %2163 = vmatprep.subr.bf16.mxu0 0
        %2164 = vmatpush2.bf16.msra.mxu0 %v2106
        %2165 = vmatprep.subr.bf16.mxu0 0
        %2166 = vmatpush2.bf16.msra.mxu0 %v2105
        %2167 = vmatprep.subr.bf16.mxu0 0
        %2168 = vmatpush2.bf16.msra.mxu0 %v2104
        %2169 = vmatprep.subr.bf16.mxu0 0
        %2170 = vmatpush2.bf16.msra.mxu0 %v2103
        %2171 = vmatprep.subr.bf16.mxu0 0
        %2172 = vmatpush2.bf16.msra.mxu0 %v2102
        %2173 = vmatprep.subr.bf16.mxu0 0
        %2174 = vmatpush2.bf16.msra.mxu0 %v2101
        %2175 = vmatprep.subr.bf16.mxu0 0
        %2176 = vmatpush2.bf16.msra.mxu0 %v2100
        %2177 = vmatprep.mubr.bf16.mxu0 %v1636
        %2178 = vmatmul.mubr.bf16.gmra.mxu0 %v1635
        %v2179 = vpop.f32.mrf.mxu0
        %v2180 = vadd.f32 %v1987, %v2179
        %v2181 = vpop.f32.mrf.mxu0
        %v2182 = vpop.f32.mrf.mxu0
        %v2183 = vpop.f32.mrf.mxu0
        %2184 = vdwg.mxu0
        %2185 = vmatprep.subr.bf16.mxu0 0
        %2186 = vmatpush1.bf16.msra.mxu0 %v2115
        %2187 = vmatprep.subr.bf16.mxu0 0
        %2188 = vmatpush1.bf16.msra.mxu0 %v2114
        %2189 = vmatprep.subr.bf16.mxu0 0
        %2190 = vmatpush1.bf16.msra.mxu0 %v2113
        %2191 = vmatprep.subr.bf16.mxu0 0
        %2192 = vmatpush1.bf16.msra.mxu0 %v2112
        %2193 = vmatprep.subr.bf16.mxu0 0
        %2194 = vmatpush1.bf16.msra.mxu0 %v2111
        %2195 = vmatprep.subr.bf16.mxu0 0
        %2196 = vmatpush1.bf16.msra.mxu0 %v2110
        %2197 = vmatprep.subr.bf16.mxu0 0
        %2198 = vmatpush1.bf16.msra.mxu0 %v2109
        %2199 = vmatprep.subr.bf16.mxu0 0
        %2200 = vmatpush1.bf16.msra.mxu0 %v2108
        %2201 = vmatprep.subr.bf16.mxu0 0
        %2202 = vmatpush2.bf16.msra.mxu0 0
        %2203 = vmatprep.subr.bf16.mxu0 0
        %2204 = vmatpush2.bf16.msra.mxu0 0
        %2205 = vmatprep.subr.bf16.mxu0 0
        %2206 = vmatpush2.bf16.msra.mxu0 0
        %2207 = vmatprep.subr.bf16.mxu0 0
        %2208 = vmatpush2.bf16.msra.mxu0 0
        %2209 = vmatprep.subr.bf16.mxu0 0
        %2210 = vmatpush2.bf16.msra.mxu0 0
        %2211 = vmatprep.subr.bf16.mxu0 0
        %2212 = vmatpush2.bf16.msra.mxu0 0
        %2213 = vmatprep.subr.bf16.mxu0 0
        %2214 = vmatpush2.bf16.msra.mxu0 0
        %2215 = vmatprep.subr.bf16.mxu0 0
        %2216 = vmatpush2.bf16.msra.mxu0 %v2116
        %2217 = vmatprep.mubr.bf16.mxu0 %v2143
        %2218 = vmatmul.mubr.bf16.gmra.mxu0 %v1637
        %v2219 = vpop.f32.mrf.mxu0
        %v2220 = vadd.f32 %v2180, %v2219
        %v2221 = vpop.f32.mrf.mxu0
        %v2222 = vpop.f32.mrf.mxu0
        %v2223 = vpop.f32.mrf.mxu0
        %2224 = vdwg.mxu0
        %s2225 = scalar_lea.vmem [#allocation7], 400
        %v2226 = vld [vmem:[%s2225] sm:$0xf]
        %v2227 = vld [vmem:[%s2225 + $0x4] sm:$0xf]
        %v2228 = vld [vmem:[%s2225 + $0x8] sm:$0xf]
        %v2229 = vld [vmem:[%s2225 + $0xc] sm:$0xf]
        %v2230 = vld [vmem:[%s2225 + $0x10] sm:$0xf]
        %v2231 = vld [vmem:[%s2225 + $0x14] sm:$0xf]
        %v2232 = vld [vmem:[%s2225 + $0x18] sm:$0xf]
        %v2233 = vld [vmem:[%s2225 + $0x1c] sm:$0xf]
        %v2234 = vld [vmem:[%s2225 + $0x20] sm:$0xf]
        %v2235 = vld [vmem:[%s2225 + $0x24] sm:$0xf]
        %v2236 = vld [vmem:[%s2225 + $0x28] sm:$0xf]
        %v2237 = vld [vmem:[%s2225 + $0x2c] sm:$0xf]
        %v2238 = vld [vmem:[%s2225 + $0x30] sm:$0xf]
        %v2239 = vld [vmem:[%s2225 + $0x34] sm:$0xf]
        %v2240 = vld [vmem:[%s2225 + $0x38] sm:$0xf]
        %v2241 = vld [vmem:[%s2225 + $0x3c] sm:$0xf]
        %v2242 = vld [vmem:[%s2225 + $0x40] sm:$0xf]
        %v2243 = vld [vmem:[%s2225 + $0x44] sm:$0xf]
        %v2244 = vld [vmem:[%s2225 + $0x48] sm:$0xf]
        %v2245 = vld [vmem:[%s2225 + $0x4c] sm:$0xf]
        %v2246 = vld [vmem:[%s2225 + $0x50] sm:$0xf]
        %v2247 = vld [vmem:[%s2225 + $0x54] sm:$0xf]
        %v2248 = vld [vmem:[%s2225 + $0x58] sm:$0xf]
        %v2249 = vld [vmem:[%s2225 + $0x5c] sm:$0xf]
        %v2250 = vld [vmem:[%s2225 + $0x60] sm:$0xf]
        %v2251 = vld [vmem:[%s2225 + $0x64] sm:$0xf]
        %v2252 = vld [vmem:[%s2225 + $0x68] sm:$0xf]
        %v2253 = vld [vmem:[%s2225 + $0x6c] sm:$0xf]
        %v2254 = vld [vmem:[%s2225 + $0x70] sm:$0xf]
        %v2255 = vld [vmem:[%s2225 + $0x74] sm:$0xf]
        %v2256 = vld [vmem:[%s2225 + $0x78] sm:$0xf]
        %v2257 = vld [vmem:[%s2225 + $0x7c] sm:$0xf]
        %v2258 = vld [vmem:[%s2225 + $0x80] sm:$0xf]
        %v2259 = vld [vmem:[%s2225 + $0x84] sm:$0xf]
        %v2260 = vld [vmem:[%s2225 + $0x88] sm:$0xf]
        %v2261 = vld [vmem:[%s2225 + $0x8c] sm:$0xf]
        %v2262 = vld [vmem:[%s2225 + $0x90] sm:$0xf]
        %v2263 = vld [vmem:[%s2225 + $0x94] sm:$0xf]
        %v2264 = vld [vmem:[%s2225 + $0x98] sm:$0xf]
        %v2265 = vld [vmem:[%s2225 + $0x9c] sm:$0xf]
        %v2266 = vld [vmem:[%s2225 + $0xa0] sm:$0xf]
        %v2267 = vld [vmem:[%s2225 + $0xa4] sm:$0xf]
        %v2268 = vld [vmem:[%s2225 + $0xa8] sm:$0xf]
        %v2269 = vld [vmem:[%s2225 + $0xac] sm:$0xf]
        %v2270 = vld [vmem:[%s2225 + $0xb0] sm:$0xf]
        %v2271 = vld [vmem:[%s2225 + $0xb4] sm:$0xf]
        %v2272 = vld [vmem:[%s2225 + $0xb8] sm:$0xf]
        %v2273 = vld [vmem:[%s2225 + $0xbc] sm:$0xf]
        %v2274 = vld [vmem:[%s2225 + $0xc0] sm:$0xf]
        %v2275 = vld [vmem:[%s2225 + $0xc4] sm:$0xf]
        %v2326 = vunpack.c.l.b16 %v2226
        %v2327 = vunpack.c.l.b16 %v2227
        %v2328 = vunpack.c.l.b16 %v2228
        %v2329 = vunpack.c.l.b16 %v2229
        %v2330 = vunpack.c.l.b16 %v2230
        %v2331 = vunpack.c.l.b16 %v2231
        %v2332 = vunpack.c.l.b16 %v2232
        %v2333 = vunpack.c.l.b16 %v2233
        %v2334 = vunpack.c.l.b16 %v2234
        %v2335 = vunpack.c.l.b16 %v2235
        %v2336 = vunpack.c.l.b16 %v2236
        %v2337 = vunpack.c.l.b16 %v2237
        %v2338 = vunpack.c.l.b16 %v2238
        %v2339 = vunpack.c.l.b16 %v2239
        %v2340 = vunpack.c.l.b16 %v2240
        %v2341 = vunpack.c.l.b16 %v2241
        %v2342 = vunpack.c.l.b16 %v2242
        %v2343 = vunpack.c.l.b16 %v2243
        %v2344 = vunpack.c.l.b16 %v2244
        %v2345 = vunpack.c.l.b16 %v2245
        %v2346 = vunpack.c.l.b16 %v2246
        %v2347 = vunpack.c.l.b16 %v2247
        %v2348 = vunpack.c.l.b16 %v2248
        %v2349 = vunpack.c.l.b16 %v2249
        %v2350 = vunpack.c.l.b16 %v2250
        %v2351 = vunpack.c.l.b16 %v2251
        %v2352 = vunpack.c.l.b16 %v2252
        %v2353 = vunpack.c.l.b16 %v2253
        %v2354 = vunpack.c.l.b16 %v2254
        %v2355 = vunpack.c.l.b16 %v2255
        %v2356 = vunpack.c.l.b16 %v2256
        %v2357 = vunpack.c.l.b16 %v2257
        %v2358 = vunpack.c.l.b16 %v2258
        %v2359 = vunpack.c.l.b16 %v2259
        %v2360 = vunpack.c.l.b16 %v2260
        %v2361 = vunpack.c.l.b16 %v2261
        %v2362 = vunpack.c.l.b16 %v2262
        %v2363 = vunpack.c.l.b16 %v2263
        %v2364 = vunpack.c.l.b16 %v2264
        %v2365 = vunpack.c.l.b16 %v2265
        %v2366 = vunpack.c.l.b16 %v2266
        %v2367 = vunpack.c.l.b16 %v2267
        %v2368 = vunpack.c.l.b16 %v2268
        %v2369 = vunpack.c.l.b16 %v2269
        %v2370 = vunpack.c.l.b16 %v2270
        %v2371 = vunpack.c.l.b16 %v2271
        %v2372 = vunpack.c.l.b16 %v2272
        %v2373 = vunpack.c.l.b16 %v2273
        %v2374 = vunpack.c.l.b16 %v2274
        %v2375 = vunpack.c.l.b16 %v2275
        %v2376 = vpack.c.b16 %v2327, %v2326
        %v2377 = vpack.c.b16 %v2329, %v2328
        %v2378 = vpack.c.b16 %v2331, %v2330
        %v2379 = vpack.c.b16 %v2333, %v2332
        %v2380 = vpack.c.b16 %v2335, %v2334
        %v2381 = vpack.c.b16 %v2337, %v2336
        %v2382 = vpack.c.b16 %v2339, %v2338
        %v2383 = vpack.c.b16 %v2341, %v2340
        %v2384 = vpack.c.b16 %v2343, %v2342
        %v2385 = vpack.c.b16 %v2345, %v2344
        %v2386 = vpack.c.b16 %v2347, %v2346
        %v2387 = vpack.c.b16 %v2349, %v2348
        %v2388 = vpack.c.b16 %v2351, %v2350
        %v2389 = vpack.c.b16 %v2353, %v2352
        %v2390 = vpack.c.b16 %v2355, %v2354
        %v2391 = vpack.c.b16 %v2357, %v2356
        %v2392 = vpack.c.b16 %v2359, %v2358
        %v2393 = vpack.c.b16 %v2361, %v2360
        %v2394 = vpack.c.b16 %v2363, %v2362
        %v2395 = vpack.c.b16 %v2365, %v2364
        %v2396 = vpack.c.b16 %v2367, %v2366
        %v2397 = vpack.c.b16 %v2369, %v2368
        %v2398 = vpack.c.b16 %v2371, %v2370
        %v2399 = vpack.c.b16 %v2373, %v2372
        %v2400 = vpack.c.b16 %v2375, %v2374
        %v2427 = vsel %vm740, %v1658, 0
        %2429 = vmatprep.subr.bf16.mxu0 0
        %2430 = vmatpush1.bf16.msra.mxu0 %v2383
        %2431 = vmatprep.subr.bf16.mxu0 0
        %2432 = vmatpush1.bf16.msra.mxu0 %v2382
        %2433 = vmatprep.subr.bf16.mxu0 0
        %2434 = vmatpush1.bf16.msra.mxu0 %v2381
        %2435 = vmatprep.subr.bf16.mxu0 0
        %2436 = vmatpush1.bf16.msra.mxu0 %v2380
        %2437 = vmatprep.subr.bf16.mxu0 0
        %2438 = vmatpush1.bf16.msra.mxu0 %v2379
        %2439 = vmatprep.subr.bf16.mxu0 0
        %2440 = vmatpush1.bf16.msra.mxu0 %v2378
        %2441 = vmatprep.subr.bf16.mxu0 0
        %2442 = vmatpush1.bf16.msra.mxu0 %v2377
        %2443 = vmatprep.subr.bf16.mxu0 0
        %2444 = vmatpush1.bf16.msra.mxu0 %v2376
        %2445 = vmatprep.subr.bf16.mxu0 0
        %2446 = vmatpush2.bf16.msra.mxu0 %v2391
        %2447 = vmatprep.subr.bf16.mxu0 0
        %2448 = vmatpush2.bf16.msra.mxu0 %v2390
        %2449 = vmatprep.subr.bf16.mxu0 0
        %2450 = vmatpush2.bf16.msra.mxu0 %v2389
        %2451 = vmatprep.subr.bf16.mxu0 0
        %2452 = vmatpush2.bf16.msra.mxu0 %v2388
        %2453 = vmatprep.subr.bf16.mxu0 0
        %2454 = vmatpush2.bf16.msra.mxu0 %v2387
        %2455 = vmatprep.subr.bf16.mxu0 0
        %2456 = vmatpush2.bf16.msra.mxu0 %v2386
        %2457 = vmatprep.subr.bf16.mxu0 0
        %2458 = vmatpush2.bf16.msra.mxu0 %v2385
        %2459 = vmatprep.subr.bf16.mxu0 0
        %2460 = vmatpush2.bf16.msra.mxu0 %v2384
        %2461 = vmatprep.mubr.bf16.mxu0 %v1656
        %2462 = vmatmul.mubr.bf16.gmra.mxu0 %v1655
        %v2463 = vpop.f32.mrf.mxu0
        %v2464 = vadd.f32 0.0, %v2463
        %v2465 = vpop.f32.mrf.mxu0
        %v2466 = vpop.f32.mrf.mxu0
        %v2467 = vpop.f32.mrf.mxu0
        %2468 = vdwg.mxu0
        %2469 = vmatprep.subr.bf16.mxu0 0
        %2470 = vmatpush1.bf16.msra.mxu0 %v2399
        %2471 = vmatprep.subr.bf16.mxu0 0
        %2472 = vmatpush1.bf16.msra.mxu0 %v2398
        %2473 = vmatprep.subr.bf16.mxu0 0
        %2474 = vmatpush1.bf16.msra.mxu0 %v2397
        %2475 = vmatprep.subr.bf16.mxu0 0
        %2476 = vmatpush1.bf16.msra.mxu0 %v2396
        %2477 = vmatprep.subr.bf16.mxu0 0
        %2478 = vmatpush1.bf16.msra.mxu0 %v2395
        %2479 = vmatprep.subr.bf16.mxu0 0
        %2480 = vmatpush1.bf16.msra.mxu0 %v2394
        %2481 = vmatprep.subr.bf16.mxu0 0
        %2482 = vmatpush1.bf16.msra.mxu0 %v2393
        %2483 = vmatprep.subr.bf16.mxu0 0
        %2484 = vmatpush1.bf16.msra.mxu0 %v2392
        %2485 = vmatprep.subr.bf16.mxu0 0
        %2486 = vmatpush2.bf16.msra.mxu0 0
        %2487 = vmatprep.subr.bf16.mxu0 0
        %2488 = vmatpush2.bf16.msra.mxu0 0
        %2489 = vmatprep.subr.bf16.mxu0 0
        %2490 = vmatpush2.bf16.msra.mxu0 0
        %2491 = vmatprep.subr.bf16.mxu0 0
        %2492 = vmatpush2.bf16.msra.mxu0 0
        %2493 = vmatprep.subr.bf16.mxu0 0
        %2494 = vmatpush2.bf16.msra.mxu0 0
        %2495 = vmatprep.subr.bf16.mxu0 0
        %2496 = vmatpush2.bf16.msra.mxu0 0
        %2497 = vmatprep.subr.bf16.mxu0 0
        %2498 = vmatpush2.bf16.msra.mxu0 0
        %2499 = vmatprep.subr.bf16.mxu0 0
        %2500 = vmatpush2.bf16.msra.mxu0 %v2400
        %2501 = vmatprep.mubr.bf16.mxu0 %v2427
        %2502 = vmatmul.mubr.bf16.gmra.mxu0 %v1657
        %v2503 = vpop.f32.mrf.mxu0
        %v2504 = vadd.f32 %v2464, %v2503
        %v2505 = vpop.f32.mrf.mxu0
        %v2506 = vpop.f32.mrf.mxu0
        %v2507 = vpop.f32.mrf.mxu0
        %2508 = vdwg.mxu0
        %v2509 = vadd.f32 %v2220, %v2504
        %v2510 = vld [vmem:[%s10] sm:$0x1]
        %v2512 = vlaneseq
        %v2513 = vshrl.u32 %v2512, 7
        %v2514 = vsub.s32 0, %v2513
        %v2515 = vrot.slane %v2510, %v2514
        %v2517 = vadd.f32 %v2509, %v2515
        %v2518 = vld [vmem:[%s1] sm:$0xff]
        %v2520 = vrot.slane %v2517, 7
        %2521 = vrot.lane.b32.xlu0 %v2520, 96
        %v2522 = vpop.permute.xlu0 %2521
        %vm2524 = vcmask 1040384
        %v2525 = vsel %vm2524, 0.0, %v2522
        %2527 = vset.pattern.permute.xlu0 0
        %2528 = vperm.xlu0 %2527, %v433
        %v2529 = vpop.permute.xlu0 %2528
        %v2531 = vmul.f32 %v2525, %v2529
        %v2532 = vsel %vm740, %v2531, 0.0
        %v2533 = vadd.f32 %v2517, %v2532
        %v2534 = vmul.f32 %v2533, %v2518
        %2535 = vrot.lane.b32.xlu0 %v2520, 48
        %v2536 = vpop.permute.xlu0 %2535
        %v2538 = vsel %vm2524, 0.0, %v2536
        %v2539 = vmul.f32 %v2538, %v2529
        %v2540 = vsel %vm740, %v2539, 0.0
        %2542 = vrot.lane.b32.xlu0 %v2540, 48
        %v2543 = vpop.permute.xlu0 %2542
        %v2545 = vadd.f32 %v2517, %v2543
        %2547 = vrot.lane.b32.xlu0 %v2518, 48
        %v2548 = vpop.permute.xlu0 %2547
        %v2550 = vmul.f32 %v2545, %v2548
        %2552 = vrot.lane.b32.xlu0 %v2550, 112
        %v2553 = vpop.permute.xlu0 %2552
        %vm2555 = vcmask 261120
        %v2556 = vsel %vm2555, %v2534, %v2553
        %vm2557 = vcmask 523264
        %2558 = vst.msk [vmem:[%s431] sm:$0xff] %vm2557, %v2556
        %s2559 = sand.u32 %s273, 1
        %s2560 = scalar_lea.sflag [#allocation4], %s2559
        %s2561 = sand.u32 %s273, 1
        %s2562 = smul.addr %s2561, 8
        %s2563 = scalar_lea.vmem [#allocation8], %s2562
        // Predicated region
        $region77: #{tpu_custom_call.1} parent=63 // pred_check
          %p2564 = pneg %p283
        $region78: #{tpu_custom_call.1} parent=63 // pred_check_branch
          %2566 = sbr.rel (%p2564) target = $region80
        $region79: #{tpu_custom_call.1} parent=63 // pred_region
          %s2568 = ssub.s32 128, 128
          %2569 = vsyncadd %s2560, %s2568
          %s2570 = smul.addr %s29, 128
          %s2571 = scalar_lea.hbm %s11, %s2570
          %s2573 = sshll.u32 %s2563, 4
          %s2574 = int_to_ptr.vmem [resolvable:$true] %s2573
          %2576 = dma.vmem_to_hbm [thread:$0]  %s2574, 128, %s2571, %s2560
        $region80: #{tpu_custom_call.1} parent=63 // pred_fallthru
          _
      $region64: #{tpu_custom_call.1} parent=5 // pred_fallthru
        _
      %p2577 = scmp.le.s32.totalorder 2, %s24
      // Predicated region
      $region81: #{tpu_custom_call.1} parent=5 // pred_check
        %p2578 = pneg %p2577
      $region82: #{tpu_custom_call.1} parent=5 // pred_check_branch
        %2580 = sbr.rel (%p2578) target = $region84
      $region83: #{tpu_custom_call.1} parent=5 // pred_region
        %s2581 = ssub.s32 %s24, 2
        // Predicated region
        $region85: #{tpu_custom_call.1} parent=83 // pred_check
          %p2582 = pneg %p289
        $region86: #{tpu_custom_call.1} parent=83 // pred_check_branch
          %2584 = sbr.rel (%p2582) target = $region88
        $region87: #{tpu_custom_call.1} parent=83 // pred_region
          %s2585 = sand.u32 %s274, 1
          %s2586 = scalar_lea.sflag [#allocation4], %s2585
          %s2587 = sand.u32 %s274, 1
          %s2588 = smul.addr %s2587, 8
          %s2589 = scalar_lea.vmem [#allocation8], %s2588
          %2590 = dma.done %s2586, 128
        $region88: #{tpu_custom_call.1} parent=83 // pred_fallthru
          _
      $region84: #{tpu_custom_call.1} parent=5 // pred_fallthru
        _
    $region6: #{tpu_custom_call.1} parent=1 // loop_footer
      %s28 = sadd.s32 1, %s24
    $region7: #{tpu_custom_call.1} parent=1 // loop_footer_branch
      %23 = sbr.rel target = $region3
    $region8: #{tpu_custom_call.1} parent=1 // loop_exit
      _
    %2591 = vsyncpa [#allocation3], 1
    %s2592 = scalar_lea.sflag [#allocation3], 1
    %2593 = vsyncpa %s2592, 1
    %2594 = vsyncpa [#allocation6], 1
    %2595 = vsyncpa [#allocation4], 1
    %s2596 = scalar_lea.sflag [#allocation4], 1
    %2597 = vsyncpa %s2596, 1

</llo_original>
